<compile_context>
chip_gen: v7x
topology: tpu7x:2x2x1
jax: 0.10.0
libtpu: 0.0.40
codegen_flags: <defaults>
</compile_context>

<pallas_src>
import functools

import jax
import jax.numpy as jnp
from jax.experimental import pallas as pl
from jax.experimental.pallas import tpu as pltpu


# ----------------------------- Pallas kernel ------------------------------- #
def tnn_layers_kernel(x_hbm, bias_ref, wqkv_ref, bqkv_ref, wo_ref, bo_ref,
                      ln1g_ref, ln1b_ref, w1_ref, b1_ref, w2_ref, b2_ref,
                      ln2g_ref, ln2b_ref, o_ref, copy_sem, *, Bt, S, E, H):
    bt = pl.program_id(0)        # batch-tile axis ("parallel")
    l = pl.program_id(1)         # layer axis ("arbitrary", carried)
    d = E // H
    Rt = Bt * S
    inv_E = 1.0 / float(E)

    # layer 0: DMA this batch tile's embedded tokens straight from HBM into the
    # resident output block (which doubles as the layer-to-layer activation
    # carry). x never occupies a second VMEM buffer.
    @pl.when(l == 0)
    def _():
        row0 = pl.multiple_of(bt * Rt, Rt)
        cp = pltpu.make_async_copy(x_hbm.at[pl.ds(row0, Rt), :], o_ref, copy_sem)
        cp.start()
        cp.wait()

    x = o_ref[...]                                              # (Rt, E) f32

    # ---- fused, head-major QKV projection (bf16 x bf16 -> f32 accumulate).
    # 1/sqrt(d) is already folded into the Q columns of wqkv / bqkv.
    qkv = jnp.dot(x.astype(jnp.bfloat16), wqkv_ref[0],
                  preferred_element_type=jnp.float32) + bqkv_ref[0]  # (Rt, 3E)

    # head-major split: (H, Rt, 3d) -> (H*Bt, S, 3d); z = h*Bt + b.
    # TODO(synk): this is still H lane-slices + stack; a single (0,2,1,3)
    # relayout would relieve the XLU further but is riskier to lower.
    qkv_h = jnp.stack([qkv[:, h * 3 * d:(h + 1) * 3 * d] for h in range(H)],
                      axis=0)                                   # (H, Rt, 3d)
    qkv_z = qkv_h.reshape(H * Bt, S, 3 * d)
    q = qkv_z[..., 0:d].astype(jnp.bfloat16)                    # already scaled
    k = qkv_z[..., d:2 * d].astype(jnp.bfloat16)
    v = qkv_z[..., 2 * d:3 * d].astype(jnp.bfloat16)

    # ---- batched attention (bf16 MXU inputs, f32 accumulation & softmax).
    s = jnp.einsum('zqc,zkc->zqk', q, k,
                   preferred_element_type=jnp.float32)          # (H*Bt, S, S)
    # key-padding bias (Bt,1,S) broadcast over heads & query rows in-register
    s = (s.reshape(H, Bt, S, S) + bias_ref[...][None, :, :, :]
         ).reshape(H * Bt, S, S)
    # TODO(synk): a fully padded sequence yields a uniform average here instead
    # of the NaN row nn.MultiheadAttention would produce.
    m = jnp.max(s, axis=-1, keepdims=True)
    p = jnp.exp(s - m)
    p = p * pl.reciprocal(jnp.sum(p, axis=-1, keepdims=True), approx=True)
    ctx = jnp.einsum('zqk,zkc->zqc', p.astype(jnp.bfloat16), v,
                     preferred_element_type=jnp.float32)        # (H*Bt, S, d)

    # ---- fold heads back into lanes (col = h*d + c, i.e. the torch head
    # concat), then ONE full-depth (K = E) output projection.
    ctx_cat = jnp.concatenate(
        [ctx[h * Bt:(h + 1) * Bt].reshape(Rt, d) for h in range(H)], axis=-1)
    attn = jnp.dot(ctx_cat.astype(jnp.bfloat16), wo_ref[0],
                   preferred_element_type=jnp.float32) + bo_ref[0]   # (Rt, E)

    def layer_norm(t, g, b):
        # independent sum / sum-of-squares passes; var = E[t^2] - mu^2
        s1 = jnp.sum(t, axis=-1, keepdims=True)
        s2 = jnp.sum(t * t, axis=-1, keepdims=True)
        mu = s1 * inv_E
        var = s2 * inv_E - mu * mu
        return (t - mu) * jax.lax.rsqrt(var + 1e-5) * g + b

    # ---- residual + LayerNorm 1
    y = layer_norm(attn + x, ln1g_ref[0], ln1b_ref[0])

    # ---- pointwise feed-forward: Linear -> ReLU -> Linear (bf16 weights)
    h1 = jnp.maximum(
        jnp.dot(y.astype(jnp.bfloat16), w1_ref[0],
                preferred_element_type=jnp.float32) + b1_ref[0], 0.0)
    h2 = jnp.dot(h1.astype(jnp.bfloat16), w2_ref[0],
                 preferred_element_type=jnp.float32) + b2_ref[0]

    # ---- residual + LayerNorm 2; write back into the carried output block
    o_ref[...] = layer_norm(h2 + y, ln2g_ref[0], ln2b_ref[0])


# ------------------------------- wrappers ----------------------------------- #
def tnn_transformer(x, key_bias, stacked, num_heads, batch_tiles=None):
    """x: (B, S, E) f32 embeddings; key_bias: (B, S) additive pad bias."""
    B, S, E = x.shape
    H = num_heads
    L = stacked["wqkv"].shape[0]
    Fdim = stacked["w1"].shape[2]

    # batch-tile ("parallel") grid axis: on v7x the second TensorCore takes
    # half the batch; fall back to one tile if B doesn't split cleanly.
    if batch_tiles is None:
        batch_tiles = 2 if (B % 2 == 0 and ((B // 2) * S) % 8 == 0) else 1
    assert B % batch_tiles == 0
    Bt = B // batch_tiles
    Rt = Bt * S

    x2 = x.reshape(B * S, E)
    bias = key_bias.reshape(B, 1, S).astype(jnp.float32)

    def layer_w(shape_tail):
        n = len(shape_tail)
        return pl.BlockSpec((1,) + shape_tail,
                            lambda bt, l, n=n: (l,) + (0,) * n)

    kern = functools.partial(tnn_layers_kernel, Bt=Bt, S=S, E=E, H=H)

    out = pl.pallas_call(
        kern,
        out_shape=jax.ShapeDtypeStruct((B * S, E), jnp.float32),
        grid=(batch_tiles, L),
        in_specs=[
            pl.BlockSpec(memory_space=pl.ANY),             # tokens stay in HBM
            pl.BlockSpec((Bt, 1, S), lambda bt, l: (bt, 0, 0)),  # pad-key bias
            layer_w((E, 3 * E)),               # fused head-major QKV weight (bf16)
            layer_w((1, 3 * E)),               # fused QKV bias (q-scaled)
            layer_w((E, E)),                   # output-proj weight Wo^T (bf16)
            layer_w((1, E)),                   # output-proj bias
            layer_w((1, E)), layer_w((1, E)),  # LN1 gamma / beta
            layer_w((E, Fdim)),                # FFN W1 (bf16)
            layer_w((1, Fdim)),                # FFN b1
            layer_w((Fdim, E)),                # FFN W2 (bf16)
            layer_w((1, E)),                   # FFN b2
            layer_w((1, E)), layer_w((1, E)),  # LN2 gamma / beta
        ],
        out_specs=pl.BlockSpec((Rt, E), lambda bt, l: (bt, 0)),
        scratch_shapes=[pltpu.SemaphoreType.DMA(())],
        compiler_params=pltpu.CompilerParams(
            dimension_semantics=("parallel", "arbitrary"),
            vmem_limit_bytes=64 * 1024 * 1024),
        # TODO(synk): at realistic S/E/F the (H*Bt,S,S) scores and (Rt,F) FFN
        # intermediate should be tiled flash-style / along F to fit v7x VMEM.
    )(x2, bias,
      stacked["wqkv"], stacked["bqkv"], stacked["wo"], stacked["bo"],
      stacked["ln1_g"], stacked["ln1_b"],
      stacked["w1"], stacked["b1"], stacked["w2"], stacked["b2"],
      stacked["ln2_g"], stacked["ln2_b"])
    return out.reshape(B, S, E)


def init_params(key, num_tokens, num_posits, E, F, H, num_layers):
    d = E // H
    scale = 1.0 / float(d) ** 0.5
    ks = jax.random.split(key, 2 + num_layers)
    params = {
        "tok_emb": jax.random.normal(ks[0], (num_tokens, E), jnp.float32) * 0.02,
        "pos_emb": jax.random.normal(ks[1], (num_posits, E), jnp.float32) * 0.02,
    }
    per_layer = []
    for i in range(num_layers):
        lk = jax.random.split(ks[2 + i], 7)
        in_proj = jax.random.normal(lk[0], (3 * E, E), jnp.float32) * 0.02  # torch (3E, E)
        in_bias = jax.random.normal(lk[1], (3 * E,), jnp.float32) * 0.02
        wo = jax.random.normal(lk[2], (E, E), jnp.float32) * 0.02           # torch (E, E)
        bo = jax.random.normal(lk[3], (E,), jnp.float32) * 0.02
        w1 = jax.random.normal(lk[4], (F, E), jnp.float32) * 0.02           # torch (F, E)
        b1 = jnp.zeros((F,), jnp.float32)
        w2 = jax.random.normal(lk[5], (E, F), jnp.float32) * 0.02           # torch (E, F)
        b2 = jax.random.normal(lk[6], (E,), jnp.float32) * 0.02

        # fused, head-major QKV weight [in=E, out = H * (d_q | d_k | d_v)];
        # 1/sqrt(d) folded into the Q columns and Q bias (before the bf16 cast).
        wq_t = in_proj[:E].T * scale
        wk_t = in_proj[E:2 * E].T
        wv_t = in_proj[2 * E:].T
        w_qkv = jnp.concatenate(
            [wq_t.reshape(E, H, d), wk_t.reshape(E, H, d), wv_t.reshape(E, H, d)],
            axis=-1).reshape(E, 3 * E)
        b_qkv = jnp.concatenate(
            [(in_bias[:E] * scale).reshape(H, d),
             in_bias[E:2 * E].reshape(H, d),
             in_bias[2 * E:].reshape(H, d)], axis=-1).reshape(1, 3 * E)

        per_layer.append({
            "wqkv": w_qkv.astype(jnp.bfloat16),
            "bqkv": b_qkv,
            "wo": wo.T.astype(jnp.bfloat16),        # (in=E, out=E) = Wo^T
            "bo": bo.reshape(1, E),
            "ln1_g": jnp.ones((1, E), jnp.float32),
            "ln1_b": jnp.zeros((1, E), jnp.float32),
            "w1": w1.T.astype(jnp.bfloat16),
            "b1": b1.reshape(1, F),
            "w2": w2.T.astype(jnp.bfloat16),
            "b2": b2.reshape(1, E),
            "ln2_g": jnp.ones((1, E), jnp.float32),
            "ln2_b": jnp.zeros((1, E), jnp.float32),
        })
    # stack every per-layer tensor along a leading layer axis for the grid
    params["stacked"] = {k: jnp.stack([lw[k] for lw in per_layer], axis=0)
                         for k in per_layer[0]}
    return params


def tnn_forward(params, token_index, num_heads, pad_id=0):
    """TNN.forward with the token_index path; dropout is identity (inference)."""
    B, S = token_index.shape
    pad_mask = token_index == pad_id                                   # (B, S)
    key_bias = jnp.where(pad_mask, -1e30, 0.0).astype(jnp.float32)     # additive
    posit_embed = params["pos_emb"][jnp.arange(S)][None]               # (1, S, E)
    token_embed = jnp.take(params["tok_emb"], token_index, axis=0)     # (B, S, E)
    x = (token_embed + posit_embed).astype(jnp.float32)                # dropout -> id
    # TODO(synk): attention weights (second tuple element of TransformerLayer)
    # are discarded by TNN.forward, so they are not materialized here.
    return tnn_transformer(x, key_bias, params["stacked"], num_heads)


# --------------------------------- main ------------------------------------- #
if __name__ == "__main__":
    B, S, E, H, F = 2, 8, 32, 4, 64
    NUM_TOKENS, NUM_POSITS, NUM_LAYERS, PAD_ID = 50, 16, 2, 0

    key = jax.random.PRNGKey(0)
    pkey, tkey = jax.random.split(key)
    params = init_params(pkey, NUM_TOKENS, NUM_POSITS, E, F, H, NUM_LAYERS)

    token_index = jax.random.randint(tkey, (B, S), 0, NUM_TOKENS, dtype=jnp.int32)
    # force a couple of pad tokens to exercise the key-padding mask
    token_index = token_index.at[1, -2:].set(PAD_ID)

    out = tnn_forward(params, token_index, num_heads=H, pad_id=PAD_ID)
    out = jax.block_until_ready(out)
    assert out.shape == (B, S, E) and out.dtype == jnp.float32
    assert bool(jnp.all(jnp.isfinite(out)))
    print("KERNEL_OK")
</pallas_src>

<mosaic_0001>
module attributes {stable_mosaic.version = 11 : i64} {
  func.func @tnn_layers_kernel(%arg0: i32, %arg1: i32, %arg2: memref<16x32xf32, #tpu.memory_space<any>>, %arg3: memref<1x1x8xf32, #tpu.memory_space<vmem>>, %arg4: memref<1x32x96xbf16, #tpu.memory_space<vmem>>, %arg5: memref<1x1x96xf32, #tpu.memory_space<vmem>>, %arg6: memref<1x32x32xbf16, #tpu.memory_space<vmem>>, %arg7: memref<1x1x32xf32, #tpu.memory_space<vmem>>, %arg8: memref<1x1x32xf32, #tpu.memory_space<vmem>>, %arg9: memref<1x1x32xf32, #tpu.memory_space<vmem>>, %arg10: memref<1x32x64xbf16, #tpu.memory_space<vmem>>, %arg11: memref<1x1x64xf32, #tpu.memory_space<vmem>>, %arg12: memref<1x64x32xbf16, #tpu.memory_space<vmem>>, %arg13: memref<1x1x32xf32, #tpu.memory_space<vmem>>, %arg14: memref<1x1x32xf32, #tpu.memory_space<vmem>>, %arg15: memref<1x1x32xf32, #tpu.memory_space<vmem>>, %arg16: memref<8x32xf32, #tpu.memory_space<vmem>>, %arg17: memref<!tpu.dma_semaphore, #tpu.memory_space<semaphore_mem>>) attributes {dimension_semantics = [#tpu.dimension_semantics<parallel>, #tpu.dimension_semantics<arbitrary>], iteration_bounds = array<i64: 2, 2>, scalar_prefetch = 0 : i64, scratch_operands = 1 : i64, tpu.core_type = #tpu.core_type<tc>, window_params = [{}, {transform_indices = @transform_1, window_bounds = array<i64: 1, 1, 8>}, {transform_indices = @transform_2, window_bounds = array<i64: 1, 32, 96>}, {transform_indices = @transform_3, window_bounds = array<i64: 1, 1, 96>}, {transform_indices = @transform_4, window_bounds = array<i64: 1, 32, 32>}, {transform_indices = @transform_5, window_bounds = array<i64: 1, 1, 32>}, {transform_indices = @transform_6, window_bounds = array<i64: 1, 1, 32>}, {transform_indices = @transform_7, window_bounds = array<i64: 1, 1, 32>}, {transform_indices = @transform_8, window_bounds = array<i64: 1, 32, 64>}, {transform_indices = @transform_9, window_bounds = array<i64: 1, 1, 64>}, {transform_indices = @transform_10, window_bounds = array<i64: 1, 64, 32>}, {transform_indices = @transform_11, window_bounds = array<i64: 1, 1, 32>}, {transform_indices = @transform_12, window_bounds = array<i64: 1, 1, 32>}, {transform_indices = @transform_13, window_bounds = array<i64: 1, 1, 32>}, {transform_indices = @transform_14, window_bounds = array<i64: 8, 32>}]} {
    %c0_i32 = arith.constant 0 : i32
    %0 = arith.cmpi eq, %arg1, %c0_i32 : i32
    %1 = arith.extui %0 : i1 to i32
    %c0_i32_0 = arith.constant 0 : i32
    %2 = arith.cmpi ne, %1, %c0_i32_0 : i32
    scf.if %2 {
      %c8_i32 = arith.constant 8 : i32
      %136 = arith.muli %arg0, %c8_i32 : i32
      %137 = tpu.assume_multiple %136, 8 : i32
      %c0_i32_61 = arith.constant 0 : i32
      %138 = tpu.memref_slice %arg2[%137, %c0_i32_61] : memref<16x32xf32, #tpu.memory_space<any>> -> memref<8x32xf32, #tpu.memory_space<any>>
      tpu.enqueue_dma source(%138 : memref<8x32xf32, #tpu.memory_space<any>>) target(%arg16 : memref<8x32xf32, #tpu.memory_space<vmem>>) target_semaphore(%arg17 : memref<!tpu.dma_semaphore, #tpu.memory_space<semaphore_mem>>)
      %c0_i32_62 = arith.constant 0 : i32
      %139 = tpu.memref_slice %arg2[%137, %c0_i32_62] : memref<16x32xf32, #tpu.memory_space<any>> -> memref<8x32xf32, #tpu.memory_space<any>>
      tpu.wait_dma2 semaphore(%arg17 : memref<!tpu.dma_semaphore, #tpu.memory_space<semaphore_mem>>) src(%139 : memref<8x32xf32, #tpu.memory_space<any>>) dst(%arg16 : memref<8x32xf32, #tpu.memory_space<vmem>>)
    } else {
    }
    %c0 = arith.constant 0 : index
    %c0_1 = arith.constant 0 : index
    %3 = vector.load %arg16[%c0, %c0_1] : memref<8x32xf32, #tpu.memory_space<vmem>>, vector<8x32xf32>
    %4 = arith.truncf %3 : vector<8x32xf32> to vector<8x32xbf16>
    %c0_2 = arith.constant 0 : index
    %c0_3 = arith.constant 0 : index
    %c0_4 = arith.constant 0 : index
    %5 = vector.load %arg4[%c0_2, %c0_3, %c0_4] : memref<1x32x96xbf16, #tpu.memory_space<vmem>>, vector<1x32x96xbf16>
    %6 = vector.shape_cast %5 : vector<1x32x96xbf16> to vector<32x96xbf16>
    %cst = arith.constant dense<0.000000e+00> : vector<8x96xf32>
    %7 = tpu.matmul %4, %6, %cst {dimension_numbers = #tpu.dot_dimension_numbers<[1], [0], [0], [1], [0, 0, 1, 1], [], []>} : vector<8x32xbf16>, vector<32x96xbf16>, vector<8x96xf32> -> vector<8x96xf32>
    %c0_5 = arith.constant 0 : index
    %c0_6 = arith.constant 0 : index
    %c0_7 = arith.constant 0 : index
    %8 = vector.load %arg5[%c0_5, %c0_6, %c0_7] : memref<1x1x96xf32, #tpu.memory_space<vmem>>, vector<1x1x96xf32>
    %9 = vector.shape_cast %8 : vector<1x1x96xf32> to vector<1x96xf32>
    %10 = vector.broadcast %9 : vector<1x96xf32> to vector<8x96xf32>
    %11 = arith.addf %7, %10 : vector<8x96xf32>
    %12 = vector.extract_strided_slice %11 {offsets = [0, 0], sizes = [8, 24], strides = [1, 1]} : vector<8x96xf32> to vector<8x24xf32>
    %13 = vector.extract_strided_slice %11 {offsets = [0, 24], sizes = [8, 24], strides = [1, 1]} : vector<8x96xf32> to vector<8x24xf32>
    %14 = vector.extract_strided_slice %11 {offsets = [0, 48], sizes = [8, 24], strides = [1, 1]} : vector<8x96xf32> to vector<8x24xf32>
    %15 = vector.extract_strided_slice %11 {offsets = [0, 72], sizes = [8, 24], strides = [1, 1]} : vector<8x96xf32> to vector<8x24xf32>
    %16 = vector.shape_cast %12 : vector<8x24xf32> to vector<1x8x24xf32>
    %17 = vector.shape_cast %13 : vector<8x24xf32> to vector<1x8x24xf32>
    %18 = vector.shape_cast %14 : vector<8x24xf32> to vector<1x8x24xf32>
    %19 = vector.shape_cast %15 : vector<8x24xf32> to vector<1x8x24xf32>
    %20 = tpu.concatenate %16, %17, %18, %19 in 0 : vector<1x8x24xf32>, vector<1x8x24xf32>, vector<1x8x24xf32>, vector<1x8x24xf32> -> vector<4x8x24xf32>
    %21 = vector.extract_strided_slice %20 {offsets = [0, 0, 0], sizes = [4, 8, 8], strides = [1, 1, 1]} : vector<4x8x24xf32> to vector<4x8x8xf32>
    %22 = arith.truncf %21 : vector<4x8x8xf32> to vector<4x8x8xbf16>
    %23 = vector.extract_strided_slice %20 {offsets = [0, 0, 8], sizes = [4, 8, 8], strides = [1, 1, 1]} : vector<4x8x24xf32> to vector<4x8x8xf32>
    %24 = arith.truncf %23 : vector<4x8x8xf32> to vector<4x8x8xbf16>
    %25 = vector.extract_strided_slice %20 {offsets = [0, 0, 16], sizes = [4, 8, 8], strides = [1, 1, 1]} : vector<4x8x24xf32> to vector<4x8x8xf32>
    %26 = arith.truncf %25 : vector<4x8x8xf32> to vector<4x8x8xbf16>
    "tpu.trace_start"() <{level = 10 : i32, message = "zqc,zkc->zqk"}> : () -> ()
    %cst_8 = arith.constant dense<0.000000e+00> : vector<4x8x8xf32>
    %27 = tpu.matmul %22, %24, %cst_8 {dimension_numbers = #tpu.dot_dimension_numbers<[2], [2], [1], [1], [0, 0, 0, 1, 1, 1], [0], [0]>} : vector<4x8x8xbf16>, vector<4x8x8xbf16>, vector<4x8x8xf32> -> vector<4x8x8xf32>
    "tpu.trace_stop"() : () -> ()
    %28 = vector.shape_cast %27 : vector<4x8x8xf32> to vector<4x1x8x8xf32>
    %c0_9 = arith.constant 0 : index
    %c0_10 = arith.constant 0 : index
    %c0_11 = arith.constant 0 : index
    %29 = vector.load %arg3[%c0_9, %c0_10, %c0_11] : memref<1x1x8xf32, #tpu.memory_space<vmem>>, vector<1x1x8xf32>
    %30 = vector.shape_cast %29 : vector<1x1x8xf32> to vector<1x1x1x8xf32>
    %31 = vector.broadcast %30 : vector<1x1x1x8xf32> to vector<4x1x8x8xf32>
    %32 = arith.addf %28, %31 : vector<4x1x8x8xf32>
    %33 = vector.shape_cast %32 : vector<4x1x8x8xf32> to vector<4x8x8xf32>
    %cst_12 = arith.constant dense<0xFF800000> : vector<4x8xf32>
    %34 = vector.multi_reduction <maximumf>, %33, %cst_12 [2] : vector<4x8x8xf32> to vector<4x8xf32>
    %35 = vector.shape_cast %34 : vector<4x8xf32> to vector<4x8x1xf32>
    %36 = vector.broadcast %35 : vector<4x8x1xf32> to vector<4x8x8xf32>
    %37 = arith.subf %33, %36 : vector<4x8x8xf32>
    %38 = math.exp %37 : vector<4x8x8xf32>
    %cst_13 = arith.constant dense<0.000000e+00> : vector<4x8xf32>
    %39 = vector.multi_reduction <add>, %38, %cst_13 [2] : vector<4x8x8xf32> to vector<4x8xf32>
    %40 = vector.shape_cast %39 : vector<4x8xf32> to vector<4x8x1xf32>
    %41 = tpu.reciprocal %40 {approx = true} : vector<4x8x1xf32> -> vector<4x8x1xf32>
    %42 = vector.broadcast %41 : vector<4x8x1xf32> to vector<4x8x8xf32>
    %43 = arith.mulf %38, %42 : vector<4x8x8xf32>
    %44 = arith.truncf %43 : vector<4x8x8xf32> to vector<4x8x8xbf16>
    "tpu.trace_start"() <{level = 10 : i32, message = "zqk,zkc->zqc"}> : () -> ()
    %cst_14 = arith.constant dense<0.000000e+00> : vector<4x8x8xf32>
    %45 = tpu.matmul %44, %26, %cst_14 {dimension_numbers = #tpu.dot_dimension_numbers<[2], [1], [1], [2], [0, 0, 0, 1, 1, 2], [0], [0]>} : vector<4x8x8xbf16>, vector<4x8x8xbf16>, vector<4x8x8xf32> -> vector<4x8x8xf32>
    "tpu.trace_stop"() : () -> ()
    %46 = vector.extract_strided_slice %45 {offsets = [0, 0, 0], sizes = [1, 8, 8], strides = [1, 1, 1]} : vector<4x8x8xf32> to vector<1x8x8xf32>
    %47 = vector.shape_cast %46 : vector<1x8x8xf32> to vector<8x8xf32>
    %48 = vector.extract_strided_slice %45 {offsets = [1, 0, 0], sizes = [1, 8, 8], strides = [1, 1, 1]} : vector<4x8x8xf32> to vector<1x8x8xf32>
    %49 = vector.shape_cast %48 : vector<1x8x8xf32> to vector<8x8xf32>
    %50 = vector.extract_strided_slice %45 {offsets = [2, 0, 0], sizes = [1, 8, 8], strides = [1, 1, 1]} : vector<4x8x8xf32> to vector<1x8x8xf32>
    %51 = vector.shape_cast %50 : vector<1x8x8xf32> to vector<8x8xf32>
    %52 = vector.extract_strided_slice %45 {offsets = [3, 0, 0], sizes = [1, 8, 8], strides = [1, 1, 1]} : vector<4x8x8xf32> to vector<1x8x8xf32>
    %53 = vector.shape_cast %52 : vector<1x8x8xf32> to vector<8x8xf32>
    %54 = tpu.concatenate %47, %49, %51, %53 in 1 : vector<8x8xf32>, vector<8x8xf32>, vector<8x8xf32>, vector<8x8xf32> -> vector<8x32xf32>
    %55 = arith.truncf %54 : vector<8x32xf32> to vector<8x32xbf16>
    %c0_15 = arith.constant 0 : index
    %c0_16 = arith.constant 0 : index
    %c0_17 = arith.constant 0 : index
    %56 = vector.load %arg6[%c0_15, %c0_16, %c0_17] : memref<1x32x32xbf16, #tpu.memory_space<vmem>>, vector<1x32x32xbf16>
    %57 = vector.shape_cast %56 : vector<1x32x32xbf16> to vector<32x32xbf16>
    %cst_18 = arith.constant dense<0.000000e+00> : vector<8x32xf32>
    %58 = tpu.matmul %55, %57, %cst_18 {dimension_numbers = #tpu.dot_dimension_numbers<[1], [0], [0], [1], [0, 0, 1, 1], [], []>} : vector<8x32xbf16>, vector<32x32xbf16>, vector<8x32xf32> -> vector<8x32xf32>
    %c0_19 = arith.constant 0 : index
    %c0_20 = arith.constant 0 : index
    %c0_21 = arith.constant 0 : index
    %59 = vector.load %arg7[%c0_19, %c0_20, %c0_21] : memref<1x1x32xf32, #tpu.memory_space<vmem>>, vector<1x1x32xf32>
    %60 = vector.shape_cast %59 : vector<1x1x32xf32> to vector<1x32xf32>
    %61 = vector.broadcast %60 : vector<1x32xf32> to vector<8x32xf32>
    %62 = arith.addf %58, %61 : vector<8x32xf32>
    %63 = arith.addf %62, %3 : vector<8x32xf32>
    %c0_22 = arith.constant 0 : index
    %c0_23 = arith.constant 0 : index
    %c0_24 = arith.constant 0 : index
    %64 = vector.load %arg8[%c0_22, %c0_23, %c0_24] : memref<1x1x32xf32, #tpu.memory_space<vmem>>, vector<1x1x32xf32>
    %65 = vector.shape_cast %64 : vector<1x1x32xf32> to vector<1x32xf32>
    %c0_25 = arith.constant 0 : index
    %c0_26 = arith.constant 0 : index
    %c0_27 = arith.constant 0 : index
    %66 = vector.load %arg9[%c0_25, %c0_26, %c0_27] : memref<1x1x32xf32, #tpu.memory_space<vmem>>, vector<1x1x32xf32>
    %67 = vector.shape_cast %66 : vector<1x1x32xf32> to vector<1x32xf32>
    %cst_28 = arith.constant dense<0.000000e+00> : vector<8xf32>
    %68 = vector.multi_reduction <add>, %63, %cst_28 [1] : vector<8x32xf32> to vector<8xf32>
    %69 = vector.shape_cast %68 : vector<8xf32> to vector<8x1xf32>
    %70 = arith.mulf %63, %63 : vector<8x32xf32>
    %cst_29 = arith.constant dense<0.000000e+00> : vector<8xf32>
    %71 = vector.multi_reduction <add>, %70, %cst_29 [1] : vector<8x32xf32> to vector<8xf32>
    %72 = vector.shape_cast %71 : vector<8xf32> to vector<8x1xf32>
    %cst_30 = arith.constant 3.125000e-02 : f32
    %73 = vector.broadcast %cst_30 : f32 to vector<8x1xf32>
    %74 = arith.mulf %69, %73 : vector<8x1xf32>
    %cst_31 = arith.constant 3.125000e-02 : f32
    %75 = vector.broadcast %cst_31 : f32 to vector<8x1xf32>
    %76 = arith.mulf %72, %75 : vector<8x1xf32>
    %77 = arith.mulf %74, %74 : vector<8x1xf32>
    %78 = arith.subf %76, %77 : vector<8x1xf32>
    %79 = vector.broadcast %74 : vector<8x1xf32> to vector<8x32xf32>
    %80 = arith.subf %63, %79 : vector<8x32xf32>
    %cst_32 = arith.constant 9.99999974E-6 : f32
    %81 = vector.broadcast %cst_32 : f32 to vector<8x1xf32>
    %82 = arith.addf %78, %81 : vector<8x1xf32>
    %83 = math.rsqrt %82 : vector<8x1xf32>
    %84 = vector.broadcast %83 : vector<8x1xf32> to vector<8x32xf32>
    %85 = arith.mulf %80, %84 : vector<8x32xf32>
    %86 = vector.broadcast %65 : vector<1x32xf32> to vector<8x32xf32>
    %87 = arith.mulf %85, %86 : vector<8x32xf32>
    %88 = vector.broadcast %67 : vector<1x32xf32> to vector<8x32xf32>
    %89 = arith.addf %87, %88 : vector<8x32xf32>
    %90 = arith.truncf %89 : vector<8x32xf32> to vector<8x32xbf16>
    %c0_33 = arith.constant 0 : index
    %c0_34 = arith.constant 0 : index
    %c0_35 = arith.constant 0 : index
    %91 = vector.load %arg10[%c0_33, %c0_34, %c0_35] : memref<1x32x64xbf16, #tpu.memory_space<vmem>>, vector<1x32x64xbf16>
    %92 = vector.shape_cast %91 : vector<1x32x64xbf16> to vector<32x64xbf16>
    %cst_36 = arith.constant dense<0.000000e+00> : vector<8x64xf32>
    %93 = tpu.matmul %90, %92, %cst_36 {dimension_numbers = #tpu.dot_dimension_numbers<[1], [0], [0], [1], [0, 0, 1, 1], [], []>} : vector<8x32xbf16>, vector<32x64xbf16>, vector<8x64xf32> -> vector<8x64xf32>
    %c0_37 = arith.constant 0 : index
    %c0_38 = arith.constant 0 : index
    %c0_39 = arith.constant 0 : index
    %94 = vector.load %arg11[%c0_37, %c0_38, %c0_39] : memref<1x1x64xf32, #tpu.memory_space<vmem>>, vector<1x1x64xf32>
    %95 = vector.shape_cast %94 : vector<1x1x64xf32> to vector<1x64xf32>
    %96 = vector.broadcast %95 : vector<1x64xf32> to vector<8x64xf32>
    %97 = arith.addf %93, %96 : vector<8x64xf32>
    %cst_40 = arith.constant 0.000000e+00 : f32
    %98 = vector.broadcast %cst_40 : f32 to vector<8x64xf32>
    %99 = arith.maximumf %97, %98 : vector<8x64xf32>
    %100 = arith.truncf %99 : vector<8x64xf32> to vector<8x64xbf16>
    %c0_41 = arith.constant 0 : index
    %c0_42 = arith.constant 0 : index
    %c0_43 = arith.constant 0 : index
    %101 = vector.load %arg12[%c0_41, %c0_42, %c0_43] : memref<1x64x32xbf16, #tpu.memory_space<vmem>>, vector<1x64x32xbf16>
    %102 = vector.shape_cast %101 : vector<1x64x32xbf16> to vector<64x32xbf16>
    %cst_44 = arith.constant dense<0.000000e+00> : vector<8x32xf32>
    %103 = tpu.matmul %100, %102, %cst_44 {dimension_numbers = #tpu.dot_dimension_numbers<[1], [0], [0], [1], [0, 0, 1, 1], [], []>} : vector<8x64xbf16>, vector<64x32xbf16>, vector<8x32xf32> -> vector<8x32xf32>
    %c0_45 = arith.constant 0 : index
    %c0_46 = arith.constant 0 : index
    %c0_47 = arith.constant 0 : index
    %104 = vector.load %arg13[%c0_45, %c0_46, %c0_47] : memref<1x1x32xf32, #tpu.memory_space<vmem>>, vector<1x1x32xf32>
    %105 = vector.shape_cast %104 : vector<1x1x32xf32> to vector<1x32xf32>
    %106 = vector.broadcast %105 : vector<1x32xf32> to vector<8x32xf32>
    %107 = arith.addf %103, %106 : vector<8x32xf32>
    %108 = arith.addf %107, %89 : vector<8x32xf32>
    %c0_48 = arith.constant 0 : index
    %c0_49 = arith.constant 0 : index
    %c0_50 = arith.constant 0 : index
    %109 = vector.load %arg14[%c0_48, %c0_49, %c0_50] : memref<1x1x32xf32, #tpu.memory_space<vmem>>, vector<1x1x32xf32>
    %110 = vector.shape_cast %109 : vector<1x1x32xf32> to vector<1x32xf32>
    %c0_51 = arith.constant 0 : index
    %c0_52 = arith.constant 0 : index
    %c0_53 = arith.constant 0 : index
    %111 = vector.load %arg15[%c0_51, %c0_52, %c0_53] : memref<1x1x32xf32, #tpu.memory_space<vmem>>, vector<1x1x32xf32>
    %112 = vector.shape_cast %111 : vector<1x1x32xf32> to vector<1x32xf32>
    %cst_54 = arith.constant dense<0.000000e+00> : vector<8xf32>
    %113 = vector.multi_reduction <add>, %108, %cst_54 [1] : vector<8x32xf32> to vector<8xf32>
    %114 = vector.shape_cast %113 : vector<8xf32> to vector<8x1xf32>
    %115 = arith.mulf %108, %108 : vector<8x32xf32>
    %cst_55 = arith.constant dense<0.000000e+00> : vector<8xf32>
    %116 = vector.multi_reduction <add>, %115, %cst_55 [1] : vector<8x32xf32> to vector<8xf32>
    %117 = vector.shape_cast %116 : vector<8xf32> to vector<8x1xf32>
    %cst_56 = arith.constant 3.125000e-02 : f32
    %118 = vector.broadcast %cst_56 : f32 to vector<8x1xf32>
    %119 = arith.mulf %114, %118 : vector<8x1xf32>
    %cst_57 = arith.constant 3.125000e-02 : f32
    %120 = vector.broadcast %cst_57 : f32 to vector<8x1xf32>
    %121 = arith.mulf %117, %120 : vector<8x1xf32>
    %122 = arith.mulf %119, %119 : vector<8x1xf32>
    %123 = arith.subf %121, %122 : vector<8x1xf32>
    %124 = vector.broadcast %119 : vector<8x1xf32> to vector<8x32xf32>
    %125 = arith.subf %108, %124 : vector<8x32xf32>
    %cst_58 = arith.constant 9.99999974E-6 : f32
    %126 = vector.broadcast %cst_58 : f32 to vector<8x1xf32>
    %127 = arith.addf %123, %126 : vector<8x1xf32>
    %128 = math.rsqrt %127 : vector<8x1xf32>
    %129 = vector.broadcast %128 : vector<8x1xf32> to vector<8x32xf32>
    %130 = arith.mulf %125, %129 : vector<8x32xf32>
    %131 = vector.broadcast %110 : vector<1x32xf32> to vector<8x32xf32>
    %132 = arith.mulf %130, %131 : vector<8x32xf32>
    %133 = vector.broadcast %112 : vector<1x32xf32> to vector<8x32xf32>
    %134 = arith.addf %132, %133 : vector<8x32xf32>
    %c0_59 = arith.constant 0 : index
    %c0_60 = arith.constant 0 : index
    %135 = vector.load %arg16[%c0_59, %c0_60] : memref<8x32xf32, #tpu.memory_space<vmem>>, vector<8x32xf32>
    tpu.vector_store %arg16[%c0_59, %c0_60], %134 {strides = array<i32>} : memref<8x32xf32, #tpu.memory_space<vmem>>, vector<8x32xf32>,
    return
  }
  func.func @transform_1(%arg0: i32, %arg1: i32) -> (i32, i32, i32) {
    %c0_i32 = arith.constant 0 : i32
    %c0_i32_0 = arith.constant 0 : i32
    %c0_i32_1 = arith.constant 0 : i32
    return %arg0, %c0_i32, %c0_i32_0 : i32, i32, i32
  }
  func.func @transform_2(%arg0: i32, %arg1: i32) -> (i32, i32, i32) {
    %c0_i32 = arith.constant 0 : i32
    %c0_i32_0 = arith.constant 0 : i32
    %c0_i32_1 = arith.constant 0 : i32
    return %arg1, %c0_i32, %c0_i32_0 : i32, i32, i32
  }
  func.func @transform_3(%arg0: i32, %arg1: i32) -> (i32, i32, i32) {
    %c0_i32 = arith.constant 0 : i32
    %c0_i32_0 = arith.constant 0 : i32
    %c0_i32_1 = arith.constant 0 : i32
    return %arg1, %c0_i32, %c0_i32_0 : i32, i32, i32
  }
  func.func @transform_4(%arg0: i32, %arg1: i32) -> (i32, i32, i32) {
    %c0_i32 = arith.constant 0 : i32
    %c0_i32_0 = arith.constant 0 : i32
    %c0_i32_1 = arith.constant 0 : i32
    return %arg1, %c0_i32, %c0_i32_0 : i32, i32, i32
  }
  func.func @transform_5(%arg0: i32, %arg1: i32) -> (i32, i32, i32) {
    %c0_i32 = arith.constant 0 : i32
    %c0_i32_0 = arith.constant 0 : i32
    %c0_i32_1 = arith.constant 0 : i32
    return %arg1, %c0_i32, %c0_i32_0 : i32, i32, i32
  }
  func.func @transform_6(%arg0: i32, %arg1: i32) -> (i32, i32, i32) {
    %c0_i32 = arith.constant 0 : i32
    %c0_i32_0 = arith.constant 0 : i32
    %c0_i32_1 = arith.constant 0 : i32
    return %arg1, %c0_i32, %c0_i32_0 : i32, i32, i32
  }
  func.func @transform_7(%arg0: i32, %arg1: i32) -> (i32, i32, i32) {
    %c0_i32 = arith.constant 0 : i32
    %c0_i32_0 = arith.constant 0 : i32
    %c0_i32_1 = arith.constant 0 : i32
    return %arg1, %c0_i32, %c0_i32_0 : i32, i32, i32
  }
  func.func @transform_8(%arg0: i32, %arg1: i32) -> (i32, i32, i32) {
    %c0_i32 = arith.constant 0 : i32
    %c0_i32_0 = arith.constant 0 : i32
    %c0_i32_1 = arith.constant 0 : i32
    return %arg1, %c0_i32, %c0_i32_0 : i32, i32, i32
  }
  func.func @transform_9(%arg0: i32, %arg1: i32) -> (i32, i32, i32) {
    %c0_i32 = arith.constant 0 : i32
    %c0_i32_0 = arith.constant 0 : i32
    %c0_i32_1 = arith.constant 0 : i32
    return %arg1, %c0_i32, %c0_i32_0 : i32, i32, i32
  }
  func.func @transform_10(%arg0: i32, %arg1: i32) -> (i32, i32, i32) {
    %c0_i32 = arith.constant 0 : i32
    %c0_i32_0 = arith.constant 0 : i32
    %c0_i32_1 = arith.constant 0 : i32
    return %arg1, %c0_i32, %c0_i32_0 : i32, i32, i32
  }
  func.func @transform_11(%arg0: i32, %arg1: i32) -> (i32, i32, i32) {
    %c0_i32 = arith.constant 0 : i32
    %c0_i32_0 = arith.constant 0 : i32
    %c0_i32_1 = arith.constant 0 : i32
    return %arg1, %c0_i32, %c0_i32_0 : i32, i32, i32
  }
  func.func @transform_12(%arg0: i32, %arg1: i32) -> (i32, i32, i32) {
    %c0_i32 = arith.constant 0 : i32
    %c0_i32_0 = arith.constant 0 : i32
    %c0_i32_1 = arith.constant 0 : i32
    return %arg1, %c0_i32, %c0_i32_0 : i32, i32, i32
  }
  func.func @transform_13(%arg0: i32, %arg1: i32) -> (i32, i32, i32) {
    %c0_i32 = arith.constant 0 : i32
    %c0_i32_0 = arith.constant 0 : i32
    %c0_i32_1 = arith.constant 0 : i32
    return %arg1, %c0_i32, %c0_i32_0 : i32, i32, i32
  }
  func.func @transform_14(%arg0: i32, %arg1: i32) -> (i32, i32) {
    %c0_i32 = arith.constant 0 : i32
    %c0_i32_0 = arith.constant 0 : i32
    return %arg0, %c0_i32 : i32, i32
  }
}

</mosaic_0001>

<llo_original>
// kernel: tpu_custom_call.1
$region0: #{tpu_custom_call.1}
  #allocation0 [shape = 'u32[]', space=smem, size = 0x4, offset = 0x4, fixed_abs, tag = 'smem constant byte address 0x4 - core index']
  #allocation1 [shape = 'u32[144,128]{1,0:T(1,128)}', space=vmem, size = 0x12000, scoped, tag = 'internal scratch']
  #allocation2 [shape = 's32[1]{0}', space=sflag, size = 0x4, scoped, tag = 'scratch operand']
  #allocation25 [shape = 's32[]', space=sflag, size = 0x4, offset = 0, fixed_abs, tag = 'sflag constant byte address 0x0 - dummy sync flag']
  #allocation26 [shape = 's32[]', space=sflag, size = 0x4, offset = 0, fixed_abs, tag = 'sflag constant byte address 0x0 - dummy sync flag']
  #allocation27 [shape = 'u32[]', space=smem, size = 0x4, offset = 0x44, fixed_abs, tag = 'smem constant byte address 0x44 - assertion arg 0']
  #allocation28 [shape = 'u32[]', space=smem, size = 0x4, offset = 0x48, fixed_abs, tag = 'smem constant byte address 0x48 - assertion arg 1']
  %s0 = inlined_call_operand.hbm [shape: f32[16,32], index: 0, kind: input, shape index: {}]
  %s1 = inlined_call_operand.hbm [shape: f32[2,1,8], index: 1, kind: input, shape index: {}]
  %s2 = inlined_call_operand.hbm [shape: bf16[2,32,96], index: 2, kind: input, shape index: {}]
  %s3 = inlined_call_operand.hbm [shape: f32[2,1,96], index: 3, kind: input, shape index: {}]
  %s4 = inlined_call_operand.hbm [shape: bf16[2,32,32], index: 4, kind: input, shape index: {}]
  %s5 = inlined_call_operand.hbm [shape: f32[2,1,32], index: 5, kind: input, shape index: {}]
  %s6 = inlined_call_operand.hbm [shape: f32[2,1,32], index: 6, kind: input, shape index: {}]
  %s7 = inlined_call_operand.hbm [shape: f32[2,1,32], index: 7, kind: input, shape index: {}]
  %s8 = inlined_call_operand.hbm [shape: bf16[2,32,64], index: 8, kind: input, shape index: {}]
  %s9 = inlined_call_operand.hbm [shape: f32[2,1,64], index: 9, kind: input, shape index: {}]
  %s10 = inlined_call_operand.hbm [shape: bf16[2,64,32], index: 10, kind: input, shape index: {}]
  %s11 = inlined_call_operand.hbm [shape: f32[2,1,32], index: 11, kind: input, shape index: {}]
  %s12 = inlined_call_operand.hbm [shape: f32[2,1,32], index: 12, kind: input, shape index: {}]
  %s13 = inlined_call_operand.hbm [shape: f32[2,1,32], index: 13, kind: input, shape index: {}]
  %s14 = inlined_call_operand.hbm [shape: f32[16,32], index: 14, kind: output, shape index: {}]
  %s15 = sld [smem:[#allocation0]]
  $region145: #{tpu_custom_call.1} parent=0
    _
  %s17 = ssub.s32 1, %s15
  %s18 = scalar_select 0, %s17, %s15
  $region1: #{tpu_custom_call.1} parent=0
    #allocation3 [shape = 'u8[1024]{0}', space=vmem, size = 0x400, scoped, tag = 'input window, operand 1']
    #allocation4 [shape = 's32[2]{0}', space=sflag, size = 0x8, scoped, tag = 'scoped memory for tpu_custom_call.1']
    #allocation5 [shape = 's32[2]{0}', space=sflag, size = 0x8, scoped, tag = 'scoped memory for tpu_custom_call.1']
    #allocation6 [shape = 'u8[16384]{0}', space=vmem, size = 0x4000, scoped, tag = 'input window, operand 2']
    #allocation7 [shape = 's32[2]{0}', space=sflag, size = 0x8, scoped, tag = 'scoped memory for tpu_custom_call.1']
    #allocation8 [shape = 'u8[1024]{0}', space=vmem, size = 0x400, scoped, tag = 'input window, operand 3']
    #allocation9 [shape = 'u8[16384]{0}', space=vmem, size = 0x4000, scoped, tag = 'input window, operand 4']
    #allocation10 [shape = 's32[2]{0}', space=sflag, size = 0x8, scoped, tag = 'scoped memory for tpu_custom_call.1']
    #allocation11 [shape = 'u8[1024]{0}', space=vmem, size = 0x400, scoped, tag = 'input window, operand 5']
    #allocation12 [shape = 'u8[1024]{0}', space=vmem, size = 0x400, scoped, tag = 'input window, operand 6']
    #allocation13 [shape = 's32[2]{0}', space=sflag, size = 0x8, scoped, tag = 'scoped memory for tpu_custom_call.1']
    #allocation14 [shape = 'u8[1024]{0}', space=vmem, size = 0x400, scoped, tag = 'input window, operand 7']
    #allocation15 [shape = 'u8[16384]{0}', space=vmem, size = 0x4000, scoped, tag = 'input window, operand 8']
    #allocation16 [shape = 's32[2]{0}', space=sflag, size = 0x8, scoped, tag = 'scoped memory for tpu_custom_call.1']
    #allocation17 [shape = 'u8[1024]{0}', space=vmem, size = 0x400, scoped, tag = 'input window, operand 9']
    #allocation18 [shape = 'u8[32768]{0}', space=vmem, size = 0x8000, scoped, tag = 'input window, operand 10']
    #allocation19 [shape = 's32[2]{0}', space=sflag, size = 0x8, scoped, tag = 'scoped memory for tpu_custom_call.1']
    #allocation20 [shape = 'u8[1024]{0}', space=vmem, size = 0x400, scoped, tag = 'input window, operand 11']
    #allocation21 [shape = 'u8[1024]{0}', space=vmem, size = 0x400, scoped, tag = 'input window, operand 12']
    #allocation22 [shape = 's32[2]{0}', space=sflag, size = 0x8, scoped, tag = 'scoped memory for tpu_custom_call.1']
    #allocation23 [shape = 'u8[1024]{0}', space=vmem, size = 0x400, scoped, tag = 'input window, operand 13']
    #allocation24 [shape = 'u8[8192]{0}', space=vmem, size = 0x2000, scoped, tag = 'output window, operand 0']
    %19 = vsyncpa [#allocation4], 0
    %s20 = scalar_lea.sflag [#allocation4], 1
    %21 = vsyncpa %s20, 0
    %22 = vsyncpa [#allocation7], 0
    %s23 = scalar_lea.sflag [#allocation7], 1
    %24 = vsyncpa %s23, 0
    %25 = vsyncpa [#allocation10], 0
    %s26 = scalar_lea.sflag [#allocation10], 1
    %27 = vsyncpa %s26, 0
    %28 = vsyncpa [#allocation13], 0
    %s29 = scalar_lea.sflag [#allocation13], 1
    %30 = vsyncpa %s29, 0
    %31 = vsyncpa [#allocation16], 0
    %s32 = scalar_lea.sflag [#allocation16], 1
    %33 = vsyncpa %s32, 0
    %34 = vsyncpa [#allocation19], 0
    %s35 = scalar_lea.sflag [#allocation19], 1
    %36 = vsyncpa %s35, 0
    %37 = vsyncpa [#allocation22], 0
    %s38 = scalar_lea.sflag [#allocation22], 1
    %39 = vsyncpa %s38, 0
    %40 = vsyncpa [#allocation5], 0
    %s41 = scalar_lea.sflag [#allocation5], 1
    %42 = vsyncpa %s41, 0
    loop: start=0, step=1, limit=6
    $region2: #{tpu_custom_call.1} parent=1 // loop_pre_header
      _
    $region3: #{tpu_custom_call.1} parent=1 // loop_header
      %s44 = sphi 0, %s48
      %p45 = scmp.ge.s32.totalorder %s44, 6
      %s51 = sphi 0, %s63
      %s52 = sphi 0, %s59
      %s53 = sphi 0, %s51
      %s54 = sphi 0, %s52
      %s55 = sphi 0, %s53
      %s56 = sphi 0, %s54
      %s66 = sphi 0, %s68
      %s69 = sphi 0, %s66
      %s70 = sphi 0, %s69
      %s86 = sphi 0, %s70
      %s92 = sphi 0, %s94
      %s95 = sphi 0, %s92
      %s96 = sphi 0, %s95
      %s112 = sphi 0, %s96
      %s118 = sphi 0, %s120
      %s121 = sphi 0, %s118
      %s122 = sphi 0, %s121
      %s138 = sphi 0, %s122
      %s144 = sphi 0, %s146
      %s147 = sphi 0, %s144
      %s148 = sphi 0, %s147
      %s164 = sphi 0, %s148
      %s170 = sphi 0, %s172
      %s173 = sphi 0, %s170
      %s174 = sphi 0, %s173
      %s190 = sphi 0, %s174
      %s196 = sphi 0, %s198
      %s199 = sphi 0, %s196
      %s200 = sphi 0, %s199
      %s216 = sphi 0, %s200
      %s222 = sphi 0, %s224
      %s225 = sphi 0, %s222
      %s226 = sphi 0, %s225
      %s242 = sphi 0, %s226
      %s248 = sphi 0, %s250
      %s251 = sphi 0, %s248
      %s252 = sphi 0, %s251
      %s268 = sphi 0, %s252
      %s274 = sphi 0, %s276
      %s277 = sphi 0, %s274
      %s278 = sphi 0, %s277
      %s294 = sphi 0, %s278
      %s300 = sphi 0, %s302
      %s303 = sphi 0, %s300
      %s304 = sphi 0, %s303
      %s320 = sphi 0, %s304
      %s326 = sphi 0, %s328
      %s329 = sphi 0, %s326
      %s330 = sphi 0, %s329
      %s346 = sphi 0, %s330
      %s352 = sphi 0, %s354
      %s355 = sphi 0, %s352
      %s356 = sphi 0, %s355
      %s372 = sphi 0, %s356
      %s378 = sphi 0, %s380
      %s381 = sphi 0, %s378
      %s382 = sphi 0, %s381
      %s398 = sphi 0, %s382
      %s404 = sphi 0, %s406
      %s407 = sphi 0, %s404
      %s408 = sphi 0, %s407
      %s424 = sphi 0, %s408
    $region4: #{tpu_custom_call.1} parent=1 // loop_header_branch
      %47 = sbr.rel (%p45) target = $region8
    $region5: #{tpu_custom_call.1} parent=1 // loop_body
      %s49 = ssub.s32 %s44, 1
      %s50 = ssub.s32 %s44, 2
      %s57 = sadd.s32 1, %s52
      %p58 = scmp.ge.s32.totalorder %s57, 2
      %s59 = scalar_select %p58, 0, %s57
      %s60 = sadd.s32 1, %s51
      %s61 = scalar_select %p58, %s60, %s51
      %p62 = scmp.ge.s32.totalorder %s61, 2
      %s63 = scalar_select %p62, 0, %s61
      %s64 = ssub.s32 %s51, %s63
      %p65 = scmp.eq.s32.totalorder %s64, 0
      %s67 = sadd.s32 %s66, 1
      %s68 = scalar_select %p65, %s66, %s67
      %p71 = pneg %p65
      %p72 = scmp.eq.s32.totalorder %s44, 3
      %p73 = por %p71, %p72
      %p74 = scmp.ne.s32.totalorder %s66, %s69
      %p75 = scmp.eq.s32.totalorder %s44, 0
      %p76 = por %p74, %p75
      %p77 = scmp.ne.s32.totalorder %s66, %s69
      %p78 = scmp.eq.s32.totalorder %s49, 3
      %p79 = por %p77, %p78
      %p80 = scmp.ne.s32.totalorder %s69, %s70
      %p81 = scmp.eq.s32.totalorder %s49, 0
      %p82 = por %p80, %p81
      %p83 = scmp.ne.s32.totalorder %s69, %s70
      %p84 = scmp.eq.s32.totalorder %s50, 3
      %p85 = por %p83, %p84
      %p87 = scmp.ne.s32.totalorder %s70, %s86
      %p88 = scmp.eq.s32.totalorder %s50, 0
      %p89 = por %p87, %p88
      %s90 = ssub.s32 %s52, %s59
      %p91 = scmp.eq.s32.totalorder %s90, 0
      %s93 = sadd.s32 %s92, 1
      %s94 = scalar_select %p91, %s92, %s93
      %p97 = pneg %p91
      %p98 = scmp.eq.s32.totalorder %s44, 3
      %p99 = por %p97, %p98
      %p100 = scmp.ne.s32.totalorder %s92, %s95
      %p101 = scmp.eq.s32.totalorder %s44, 0
      %p102 = por %p100, %p101
      %p103 = scmp.ne.s32.totalorder %s92, %s95
      %p104 = scmp.eq.s32.totalorder %s49, 3
      %p105 = por %p103, %p104
      %p106 = scmp.ne.s32.totalorder %s95, %s96
      %p107 = scmp.eq.s32.totalorder %s49, 0
      %p108 = por %p106, %p107
      %p109 = scmp.ne.s32.totalorder %s95, %s96
      %p110 = scmp.eq.s32.totalorder %s50, 3
      %p111 = por %p109, %p110
      %p113 = scmp.ne.s32.totalorder %s96, %s112
      %p114 = scmp.eq.s32.totalorder %s50, 0
      %p115 = por %p113, %p114
      %s116 = ssub.s32 %s52, %s59
      %p117 = scmp.eq.s32.totalorder %s116, 0
      %s119 = sadd.s32 %s118, 1
      %s120 = scalar_select %p117, %s118, %s119
      %p123 = pneg %p117
      %p124 = scmp.eq.s32.totalorder %s44, 3
      %p125 = por %p123, %p124
      %p126 = scmp.ne.s32.totalorder %s118, %s121
      %p127 = scmp.eq.s32.totalorder %s44, 0
      %p128 = por %p126, %p127
      %p129 = scmp.ne.s32.totalorder %s118, %s121
      %p130 = scmp.eq.s32.totalorder %s49, 3
      %p131 = por %p129, %p130
      %p132 = scmp.ne.s32.totalorder %s121, %s122
      %p133 = scmp.eq.s32.totalorder %s49, 0
      %p134 = por %p132, %p133
      %p135 = scmp.ne.s32.totalorder %s121, %s122
      %p136 = scmp.eq.s32.totalorder %s50, 3
      %p137 = por %p135, %p136
      %p139 = scmp.ne.s32.totalorder %s122, %s138
      %p140 = scmp.eq.s32.totalorder %s50, 0
      %p141 = por %p139, %p140
      %s142 = ssub.s32 %s52, %s59
      %p143 = scmp.eq.s32.totalorder %s142, 0
      %s145 = sadd.s32 %s144, 1
      %s146 = scalar_select %p143, %s144, %s145
      %p149 = pneg %p143
      %p150 = scmp.eq.s32.totalorder %s44, 3
      %p151 = por %p149, %p150
      %p152 = scmp.ne.s32.totalorder %s144, %s147
      %p153 = scmp.eq.s32.totalorder %s44, 0
      %p154 = por %p152, %p153
      %p155 = scmp.ne.s32.totalorder %s144, %s147
      %p156 = scmp.eq.s32.totalorder %s49, 3
      %p157 = por %p155, %p156
      %p158 = scmp.ne.s32.totalorder %s147, %s148
      %p159 = scmp.eq.s32.totalorder %s49, 0
      %p160 = por %p158, %p159
      %p161 = scmp.ne.s32.totalorder %s147, %s148
      %p162 = scmp.eq.s32.totalorder %s50, 3
      %p163 = por %p161, %p162
      %p165 = scmp.ne.s32.totalorder %s148, %s164
      %p166 = scmp.eq.s32.totalorder %s50, 0
      %p167 = por %p165, %p166
      %s168 = ssub.s32 %s52, %s59
      %p169 = scmp.eq.s32.totalorder %s168, 0
      %s171 = sadd.s32 %s170, 1
      %s172 = scalar_select %p169, %s170, %s171
      %p175 = pneg %p169
      %p176 = scmp.eq.s32.totalorder %s44, 3
      %p177 = por %p175, %p176
      %p178 = scmp.ne.s32.totalorder %s170, %s173
      %p179 = scmp.eq.s32.totalorder %s44, 0
      %p180 = por %p178, %p179
      %p181 = scmp.ne.s32.totalorder %s170, %s173
      %p182 = scmp.eq.s32.totalorder %s49, 3
      %p183 = por %p181, %p182
      %p184 = scmp.ne.s32.totalorder %s173, %s174
      %p185 = scmp.eq.s32.totalorder %s49, 0
      %p186 = por %p184, %p185
      %p187 = scmp.ne.s32.totalorder %s173, %s174
      %p188 = scmp.eq.s32.totalorder %s50, 3
      %p189 = por %p187, %p188
      %p191 = scmp.ne.s32.totalorder %s174, %s190
      %p192 = scmp.eq.s32.totalorder %s50, 0
      %p193 = por %p191, %p192
      %s194 = ssub.s32 %s52, %s59
      %p195 = scmp.eq.s32.totalorder %s194, 0
      %s197 = sadd.s32 %s196, 1
      %s198 = scalar_select %p195, %s196, %s197
      %p201 = pneg %p195
      %p202 = scmp.eq.s32.totalorder %s44, 3
      %p203 = por %p201, %p202
      %p204 = scmp.ne.s32.totalorder %s196, %s199
      %p205 = scmp.eq.s32.totalorder %s44, 0
      %p206 = por %p204, %p205
      %p207 = scmp.ne.s32.totalorder %s196, %s199
      %p208 = scmp.eq.s32.totalorder %s49, 3
      %p209 = por %p207, %p208
      %p210 = scmp.ne.s32.totalorder %s199, %s200
      %p211 = scmp.eq.s32.totalorder %s49, 0
      %p212 = por %p210, %p211
      %p213 = scmp.ne.s32.totalorder %s199, %s200
      %p214 = scmp.eq.s32.totalorder %s50, 3
      %p215 = por %p213, %p214
      %p217 = scmp.ne.s32.totalorder %s200, %s216
      %p218 = scmp.eq.s32.totalorder %s50, 0
      %p219 = por %p217, %p218
      %s220 = ssub.s32 %s52, %s59
      %p221 = scmp.eq.s32.totalorder %s220, 0
      %s223 = sadd.s32 %s222, 1
      %s224 = scalar_select %p221, %s222, %s223
      %p227 = pneg %p221
      %p228 = scmp.eq.s32.totalorder %s44, 3
      %p229 = por %p227, %p228
      %p230 = scmp.ne.s32.totalorder %s222, %s225
      %p231 = scmp.eq.s32.totalorder %s44, 0
      %p232 = por %p230, %p231
      %p233 = scmp.ne.s32.totalorder %s222, %s225
      %p234 = scmp.eq.s32.totalorder %s49, 3
      %p235 = por %p233, %p234
      %p236 = scmp.ne.s32.totalorder %s225, %s226
      %p237 = scmp.eq.s32.totalorder %s49, 0
      %p238 = por %p236, %p237
      %p239 = scmp.ne.s32.totalorder %s225, %s226
      %p240 = scmp.eq.s32.totalorder %s50, 3
      %p241 = por %p239, %p240
      %p243 = scmp.ne.s32.totalorder %s226, %s242
      %p244 = scmp.eq.s32.totalorder %s50, 0
      %p245 = por %p243, %p244
      %s246 = ssub.s32 %s52, %s59
      %p247 = scmp.eq.s32.totalorder %s246, 0
      %s249 = sadd.s32 %s248, 1
      %s250 = scalar_select %p247, %s248, %s249
      %p253 = pneg %p247
      %p254 = scmp.eq.s32.totalorder %s44, 3
      %p255 = por %p253, %p254
      %p256 = scmp.ne.s32.totalorder %s248, %s251
      %p257 = scmp.eq.s32.totalorder %s44, 0
      %p258 = por %p256, %p257
      %p259 = scmp.ne.s32.totalorder %s248, %s251
      %p260 = scmp.eq.s32.totalorder %s49, 3
      %p261 = por %p259, %p260
      %p262 = scmp.ne.s32.totalorder %s251, %s252
      %p263 = scmp.eq.s32.totalorder %s49, 0
      %p264 = por %p262, %p263
      %p265 = scmp.ne.s32.totalorder %s251, %s252
      %p266 = scmp.eq.s32.totalorder %s50, 3
      %p267 = por %p265, %p266
      %p269 = scmp.ne.s32.totalorder %s252, %s268
      %p270 = scmp.eq.s32.totalorder %s50, 0
      %p271 = por %p269, %p270
      %s272 = ssub.s32 %s52, %s59
      %p273 = scmp.eq.s32.totalorder %s272, 0
      %s275 = sadd.s32 %s274, 1
      %s276 = scalar_select %p273, %s274, %s275
      %p279 = pneg %p273
      %p280 = scmp.eq.s32.totalorder %s44, 3
      %p281 = por %p279, %p280
      %p282 = scmp.ne.s32.totalorder %s274, %s277
      %p283 = scmp.eq.s32.totalorder %s44, 0
      %p284 = por %p282, %p283
      %p285 = scmp.ne.s32.totalorder %s274, %s277
      %p286 = scmp.eq.s32.totalorder %s49, 3
      %p287 = por %p285, %p286
      %p288 = scmp.ne.s32.totalorder %s277, %s278
      %p289 = scmp.eq.s32.totalorder %s49, 0
      %p290 = por %p288, %p289
      %p291 = scmp.ne.s32.totalorder %s277, %s278
      %p292 = scmp.eq.s32.totalorder %s50, 3
      %p293 = por %p291, %p292
      %p295 = scmp.ne.s32.totalorder %s278, %s294
      %p296 = scmp.eq.s32.totalorder %s50, 0
      %p297 = por %p295, %p296
      %s298 = ssub.s32 %s52, %s59
      %p299 = scmp.eq.s32.totalorder %s298, 0
      %s301 = sadd.s32 %s300, 1
      %s302 = scalar_select %p299, %s300, %s301
      %p305 = pneg %p299
      %p306 = scmp.eq.s32.totalorder %s44, 3
      %p307 = por %p305, %p306
      %p308 = scmp.ne.s32.totalorder %s300, %s303
      %p309 = scmp.eq.s32.totalorder %s44, 0
      %p310 = por %p308, %p309
      %p311 = scmp.ne.s32.totalorder %s300, %s303
      %p312 = scmp.eq.s32.totalorder %s49, 3
      %p313 = por %p311, %p312
      %p314 = scmp.ne.s32.totalorder %s303, %s304
      %p315 = scmp.eq.s32.totalorder %s49, 0
      %p316 = por %p314, %p315
      %p317 = scmp.ne.s32.totalorder %s303, %s304
      %p318 = scmp.eq.s32.totalorder %s50, 3
      %p319 = por %p317, %p318
      %p321 = scmp.ne.s32.totalorder %s304, %s320
      %p322 = scmp.eq.s32.totalorder %s50, 0
      %p323 = por %p321, %p322
      %s324 = ssub.s32 %s52, %s59
      %p325 = scmp.eq.s32.totalorder %s324, 0
      %s327 = sadd.s32 %s326, 1
      %s328 = scalar_select %p325, %s326, %s327
      %p331 = pneg %p325
      %p332 = scmp.eq.s32.totalorder %s44, 3
      %p333 = por %p331, %p332
      %p334 = scmp.ne.s32.totalorder %s326, %s329
      %p335 = scmp.eq.s32.totalorder %s44, 0
      %p336 = por %p334, %p335
      %p337 = scmp.ne.s32.totalorder %s326, %s329
      %p338 = scmp.eq.s32.totalorder %s49, 3
      %p339 = por %p337, %p338
      %p340 = scmp.ne.s32.totalorder %s329, %s330
      %p341 = scmp.eq.s32.totalorder %s49, 0
      %p342 = por %p340, %p341
      %p343 = scmp.ne.s32.totalorder %s329, %s330
      %p344 = scmp.eq.s32.totalorder %s50, 3
      %p345 = por %p343, %p344
      %p347 = scmp.ne.s32.totalorder %s330, %s346
      %p348 = scmp.eq.s32.totalorder %s50, 0
      %p349 = por %p347, %p348
      %s350 = ssub.s32 %s52, %s59
      %p351 = scmp.eq.s32.totalorder %s350, 0
      %s353 = sadd.s32 %s352, 1
      %s354 = scalar_select %p351, %s352, %s353
      %p357 = pneg %p351
      %p358 = scmp.eq.s32.totalorder %s44, 3
      %p359 = por %p357, %p358
      %p360 = scmp.ne.s32.totalorder %s352, %s355
      %p361 = scmp.eq.s32.totalorder %s44, 0
      %p362 = por %p360, %p361
      %p363 = scmp.ne.s32.totalorder %s352, %s355
      %p364 = scmp.eq.s32.totalorder %s49, 3
      %p365 = por %p363, %p364
      %p366 = scmp.ne.s32.totalorder %s355, %s356
      %p367 = scmp.eq.s32.totalorder %s49, 0
      %p368 = por %p366, %p367
      %p369 = scmp.ne.s32.totalorder %s355, %s356
      %p370 = scmp.eq.s32.totalorder %s50, 3
      %p371 = por %p369, %p370
      %p373 = scmp.ne.s32.totalorder %s356, %s372
      %p374 = scmp.eq.s32.totalorder %s50, 0
      %p375 = por %p373, %p374
      %s376 = ssub.s32 %s52, %s59
      %p377 = scmp.eq.s32.totalorder %s376, 0
      %s379 = sadd.s32 %s378, 1
      %s380 = scalar_select %p377, %s378, %s379
      %p383 = pneg %p377
      %p384 = scmp.eq.s32.totalorder %s44, 3
      %p385 = por %p383, %p384
      %p386 = scmp.ne.s32.totalorder %s378, %s381
      %p387 = scmp.eq.s32.totalorder %s44, 0
      %p388 = por %p386, %p387
      %p389 = scmp.ne.s32.totalorder %s378, %s381
      %p390 = scmp.eq.s32.totalorder %s49, 3
      %p391 = por %p389, %p390
      %p392 = scmp.ne.s32.totalorder %s381, %s382
      %p393 = scmp.eq.s32.totalorder %s49, 0
      %p394 = por %p392, %p393
      %p395 = scmp.ne.s32.totalorder %s381, %s382
      %p396 = scmp.eq.s32.totalorder %s50, 3
      %p397 = por %p395, %p396
      %p399 = scmp.ne.s32.totalorder %s382, %s398
      %p400 = scmp.eq.s32.totalorder %s50, 0
      %p401 = por %p399, %p400
      %s402 = ssub.s32 %s51, %s63
      %p403 = scmp.eq.s32.totalorder %s402, 0
      %s405 = sadd.s32 %s404, 1
      %s406 = scalar_select %p403, %s404, %s405
      %p409 = pneg %p403
      %p410 = scmp.eq.s32.totalorder %s44, 3
      %p411 = por %p409, %p410
      %p412 = scmp.ne.s32.totalorder %s404, %s407
      %p413 = scmp.eq.s32.totalorder %s44, 0
      %p414 = por %p412, %p413
      %p415 = scmp.ne.s32.totalorder %s404, %s407
      %p416 = scmp.eq.s32.totalorder %s49, 3
      %p417 = por %p415, %p416
      %p418 = scmp.ne.s32.totalorder %s407, %s408
      %p419 = scmp.eq.s32.totalorder %s49, 0
      %p420 = por %p418, %p419
      %p421 = scmp.ne.s32.totalorder %s407, %s408
      %p422 = scmp.eq.s32.totalorder %s50, 3
      %p423 = por %p421, %p422
      %p425 = scmp.ne.s32.totalorder %s408, %s424
      %p426 = scmp.eq.s32.totalorder %s50, 0
      %p427 = por %p425, %p426
      %p428 = scmp.le.s32.totalorder 1, %s44
      %p429 = scmp.lt.s32.totalorder %s44, 5
      %p430 = pnand %p428, %p429
      %p431 = pneg %p430
      // Predicated region
      $region9: #{tpu_custom_call.1} parent=5 // pred_check
        _
      $region10: #{tpu_custom_call.1} parent=5 // pred_check_branch
        %433 = sbr.rel (%p430) target = $region12
      $region11: #{tpu_custom_call.1} parent=5 // pred_region
        %s434 = ssub.s32 %s44, 1
      $region12: #{tpu_custom_call.1} parent=5 // pred_fallthru
        _
      %p435 = scmp.lt.s32.totalorder %s44, 4
      // Predicated region
      $region13: #{tpu_custom_call.1} parent=5 // pred_check
        %p436 = pneg %p435
      $region14: #{tpu_custom_call.1} parent=5 // pred_check_branch
        %438 = sbr.rel (%p436) target = $region16
      $region15: #{tpu_custom_call.1} parent=5 // pred_region
        // Predicated region
        $region17: #{tpu_custom_call.1} parent=15 // pred_check
          %p439 = pneg %p76
        $region18: #{tpu_custom_call.1} parent=15 // pred_check_branch
          %441 = sbr.rel (%p439) target = $region20
        $region19: #{tpu_custom_call.1} parent=15 // pred_region
          %s442 = sand.u32 %s66, 1
          %s443 = scalar_lea.sflag [#allocation4], %s442
          %s444 = sand.u32 %s66, 1
          %s445 = scalar_lea.vmem [#allocation3], %s444
          %s447 = ssub.s32 16, 16
          %448 = vsyncadd %s443, %s447
          %s449 = smul.addr %s51, 16
          %s450 = scalar_lea.hbm %s1, %s449
          %s452 = sshll.u32 %s445, 4
          %s453 = int_to_ptr.vmem [resolvable:$true] %s452
          %455 = dma.hbm_to_vmem [thread:$0]  %s450, 16, %s453, %s443
        $region20: #{tpu_custom_call.1} parent=15 // pred_fallthru
          _
        // Predicated region
        $region21: #{tpu_custom_call.1} parent=15 // pred_check
          %p456 = pneg %p102
        $region22: #{tpu_custom_call.1} parent=15 // pred_check_branch
          %458 = sbr.rel (%p456) target = $region24
        $region23: #{tpu_custom_call.1} parent=15 // pred_region
          %s459 = sand.u32 %s44, 1
          %s460 = scalar_lea.sflag [#allocation7], %s459
          %s461 = sand.u32 %s92, 1
          %s462 = smul.addr %s461, 16
          %s463 = scalar_lea.vmem [#allocation6], %s462
          %s465 = ssub.s32 256, 256
          %466 = vsyncadd %s460, %s465
          %s467 = smul.addr %s52, 4
          %s468 = smul.addr %s467, 64
          %s469 = scalar_lea.hbm %s2, %s468
          %s470 = sshll.u32 %s463, 4
          %s471 = int_to_ptr.vmem [resolvable:$true] %s470
          %476 = dma.hbm_to_vmem [thread:$0]  %s469, 256, %s471, %s460, 64, 64, 4
        $region24: #{tpu_custom_call.1} parent=15 // pred_fallthru
          _
        // Predicated region
        $region25: #{tpu_custom_call.1} parent=15 // pred_check
          %p477 = pneg %p128
        $region26: #{tpu_custom_call.1} parent=15 // pred_check_branch
          %479 = sbr.rel (%p477) target = $region28
        $region27: #{tpu_custom_call.1} parent=15 // pred_region
          %s480 = sand.u32 %s44, 1
          %s481 = scalar_lea.sflag [#allocation7], %s480
          %s482 = sand.u32 %s118, 1
          %s483 = scalar_lea.vmem [#allocation8], %s482
          %s485 = ssub.s32 16, 16
          %486 = vsyncadd %s481, %s485
          %s487 = smul.addr %s52, 16
          %s488 = scalar_lea.hbm %s3, %s487
          %s490 = sshll.u32 %s483, 4
          %s491 = int_to_ptr.vmem [resolvable:$true] %s490
          %493 = dma.hbm_to_vmem [thread:$0]  %s488, 16, %s491, %s481
        $region28: #{tpu_custom_call.1} parent=15 // pred_fallthru
          _
        // Predicated region
        $region29: #{tpu_custom_call.1} parent=15 // pred_check
          %p494 = pneg %p154
        $region30: #{tpu_custom_call.1} parent=15 // pred_check_branch
          %496 = sbr.rel (%p494) target = $region32
        $region31: #{tpu_custom_call.1} parent=15 // pred_region
          %s497 = sand.u32 %s44, 1
          %s498 = scalar_lea.sflag [#allocation10], %s497
          %s499 = sand.u32 %s144, 1
          %s500 = smul.addr %s499, 16
          %s501 = scalar_lea.vmem [#allocation9], %s500
          %s503 = ssub.s32 256, 256
          %504 = vsyncadd %s498, %s503
          %s505 = smul.addr %s52, 4
          %s506 = smul.addr %s505, 64
          %s507 = scalar_lea.hbm %s4, %s506
          %s508 = sshll.u32 %s501, 4
          %s509 = int_to_ptr.vmem [resolvable:$true] %s508
          %514 = dma.hbm_to_vmem [thread:$0]  %s507, 256, %s509, %s498, 64, 64, 4
        $region32: #{tpu_custom_call.1} parent=15 // pred_fallthru
          _
        // Predicated region
        $region33: #{tpu_custom_call.1} parent=15 // pred_check
          %p515 = pneg %p180
        $region34: #{tpu_custom_call.1} parent=15 // pred_check_branch
          %517 = sbr.rel (%p515) target = $region36
        $region35: #{tpu_custom_call.1} parent=15 // pred_region
          %s518 = sand.u32 %s44, 1
          %s519 = scalar_lea.sflag [#allocation10], %s518
          %s520 = sand.u32 %s170, 1
          %s521 = scalar_lea.vmem [#allocation11], %s520
          %s523 = ssub.s32 16, 16
          %524 = vsyncadd %s519, %s523
          %s525 = smul.addr %s52, 16
          %s526 = scalar_lea.hbm %s5, %s525
          %s528 = sshll.u32 %s521, 4
          %s529 = int_to_ptr.vmem [resolvable:$true] %s528
          %531 = dma.hbm_to_vmem [thread:$0]  %s526, 16, %s529, %s519
        $region36: #{tpu_custom_call.1} parent=15 // pred_fallthru
          _
        // Predicated region
        $region37: #{tpu_custom_call.1} parent=15 // pred_check
          %p532 = pneg %p206
        $region38: #{tpu_custom_call.1} parent=15 // pred_check_branch
          %534 = sbr.rel (%p532) target = $region40
        $region39: #{tpu_custom_call.1} parent=15 // pred_region
          %s535 = sand.u32 %s44, 1
          %s536 = scalar_lea.sflag [#allocation13], %s535
          %s537 = sand.u32 %s196, 1
          %s538 = scalar_lea.vmem [#allocation12], %s537
          %s540 = ssub.s32 16, 16
          %541 = vsyncadd %s536, %s540
          %s542 = smul.addr %s52, 16
          %s543 = scalar_lea.hbm %s6, %s542
          %s545 = sshll.u32 %s538, 4
          %s546 = int_to_ptr.vmem [resolvable:$true] %s545
          %548 = dma.hbm_to_vmem [thread:$0]  %s543, 16, %s546, %s536
        $region40: #{tpu_custom_call.1} parent=15 // pred_fallthru
          _
        // Predicated region
        $region41: #{tpu_custom_call.1} parent=15 // pred_check
          %p549 = pneg %p232
        $region42: #{tpu_custom_call.1} parent=15 // pred_check_branch
          %551 = sbr.rel (%p549) target = $region44
        $region43: #{tpu_custom_call.1} parent=15 // pred_region
          %s552 = sand.u32 %s44, 1
          %s553 = scalar_lea.sflag [#allocation13], %s552
          %s554 = sand.u32 %s222, 1
          %s555 = scalar_lea.vmem [#allocation14], %s554
          %s557 = ssub.s32 16, 16
          %558 = vsyncadd %s553, %s557
          %s559 = smul.addr %s52, 16
          %s560 = scalar_lea.hbm %s7, %s559
          %s562 = sshll.u32 %s555, 4
          %s563 = int_to_ptr.vmem [resolvable:$true] %s562
          %565 = dma.hbm_to_vmem [thread:$0]  %s560, 16, %s563, %s553
        $region44: #{tpu_custom_call.1} parent=15 // pred_fallthru
          _
        // Predicated region
        $region45: #{tpu_custom_call.1} parent=15 // pred_check
          %p566 = pneg %p258
        $region46: #{tpu_custom_call.1} parent=15 // pred_check_branch
          %568 = sbr.rel (%p566) target = $region48
        $region47: #{tpu_custom_call.1} parent=15 // pred_region
          %s569 = sand.u32 %s44, 1
          %s570 = scalar_lea.sflag [#allocation16], %s569
          %s571 = sand.u32 %s248, 1
          %s572 = smul.addr %s571, 16
          %s573 = scalar_lea.vmem [#allocation15], %s572
          %s575 = ssub.s32 256, 256
          %576 = vsyncadd %s570, %s575
          %s577 = smul.addr %s52, 4
          %s578 = smul.addr %s577, 64
          %s579 = scalar_lea.hbm %s8, %s578
          %s580 = sshll.u32 %s573, 4
          %s581 = int_to_ptr.vmem [resolvable:$true] %s580
          %586 = dma.hbm_to_vmem [thread:$0]  %s579, 256, %s581, %s570, 64, 64, 4
        $region48: #{tpu_custom_call.1} parent=15 // pred_fallthru
          _
        // Predicated region
        $region49: #{tpu_custom_call.1} parent=15 // pred_check
          %p587 = pneg %p284
        $region50: #{tpu_custom_call.1} parent=15 // pred_check_branch
          %589 = sbr.rel (%p587) target = $region52
        $region51: #{tpu_custom_call.1} parent=15 // pred_region
          %s590 = sand.u32 %s44, 1
          %s591 = scalar_lea.sflag [#allocation16], %s590
          %s592 = sand.u32 %s274, 1
          %s593 = scalar_lea.vmem [#allocation17], %s592
          %s595 = ssub.s32 16, 16
          %596 = vsyncadd %s591, %s595
          %s597 = smul.addr %s52, 16
          %s598 = scalar_lea.hbm %s9, %s597
          %s600 = sshll.u32 %s593, 4
          %s601 = int_to_ptr.vmem [resolvable:$true] %s600
          %603 = dma.hbm_to_vmem [thread:$0]  %s598, 16, %s601, %s591
        $region52: #{tpu_custom_call.1} parent=15 // pred_fallthru
          _
        // Predicated region
        $region53: #{tpu_custom_call.1} parent=15 // pred_check
          %p604 = pneg %p310
        $region54: #{tpu_custom_call.1} parent=15 // pred_check_branch
          %606 = sbr.rel (%p604) target = $region56
        $region55: #{tpu_custom_call.1} parent=15 // pred_region
          %s607 = sand.u32 %s44, 1
          %s608 = scalar_lea.sflag [#allocation19], %s607
          %s609 = sand.u32 %s300, 1
          %s610 = smul.addr %s609, 32
          %s611 = scalar_lea.vmem [#allocation18], %s610
          %s613 = ssub.s32 512, 512
          %614 = vsyncadd %s608, %s613
          %s615 = smul.addr %s52, 8
          %s616 = smul.addr %s615, 64
          %s617 = scalar_lea.hbm %s10, %s616
          %s618 = sshll.u32 %s611, 4
          %s619 = int_to_ptr.vmem [resolvable:$true] %s618
          %624 = dma.hbm_to_vmem [thread:$0]  %s617, 512, %s619, %s608, 64, 64, 4
        $region56: #{tpu_custom_call.1} parent=15 // pred_fallthru
          _
        // Predicated region
        $region57: #{tpu_custom_call.1} parent=15 // pred_check
          %p625 = pneg %p336
        $region58: #{tpu_custom_call.1} parent=15 // pred_check_branch
          %627 = sbr.rel (%p625) target = $region60
        $region59: #{tpu_custom_call.1} parent=15 // pred_region
          %s628 = sand.u32 %s44, 1
          %s629 = scalar_lea.sflag [#allocation19], %s628
          %s630 = sand.u32 %s326, 1
          %s631 = scalar_lea.vmem [#allocation20], %s630
          %s633 = ssub.s32 16, 16
          %634 = vsyncadd %s629, %s633
          %s635 = smul.addr %s52, 16
          %s636 = scalar_lea.hbm %s11, %s635
          %s638 = sshll.u32 %s631, 4
          %s639 = int_to_ptr.vmem [resolvable:$true] %s638
          %641 = dma.hbm_to_vmem [thread:$0]  %s636, 16, %s639, %s629
        $region60: #{tpu_custom_call.1} parent=15 // pred_fallthru
          _
        // Predicated region
        $region61: #{tpu_custom_call.1} parent=15 // pred_check
          %p642 = pneg %p362
        $region62: #{tpu_custom_call.1} parent=15 // pred_check_branch
          %644 = sbr.rel (%p642) target = $region64
        $region63: #{tpu_custom_call.1} parent=15 // pred_region
          %s645 = sand.u32 %s44, 1
          %s646 = scalar_lea.sflag [#allocation22], %s645
          %s647 = sand.u32 %s352, 1
          %s648 = scalar_lea.vmem [#allocation21], %s647
          %s650 = ssub.s32 16, 16
          %651 = vsyncadd %s646, %s650
          %s652 = smul.addr %s52, 16
          %s653 = scalar_lea.hbm %s12, %s652
          %s655 = sshll.u32 %s648, 4
          %s656 = int_to_ptr.vmem [resolvable:$true] %s655
          %658 = dma.hbm_to_vmem [thread:$0]  %s653, 16, %s656, %s646
        $region64: #{tpu_custom_call.1} parent=15 // pred_fallthru
          _
        // Predicated region
        $region65: #{tpu_custom_call.1} parent=15 // pred_check
          %p659 = pneg %p388
        $region66: #{tpu_custom_call.1} parent=15 // pred_check_branch
          %661 = sbr.rel (%p659) target = $region68
        $region67: #{tpu_custom_call.1} parent=15 // pred_region
          %s662 = sand.u32 %s44, 1
          %s663 = scalar_lea.sflag [#allocation22], %s662
          %s664 = sand.u32 %s378, 1
          %s665 = scalar_lea.vmem [#allocation23], %s664
          %s667 = ssub.s32 16, 16
          %668 = vsyncadd %s663, %s667
          %s669 = smul.addr %s52, 16
          %s670 = scalar_lea.hbm %s13, %s669
          %s672 = sshll.u32 %s665, 4
          %s673 = int_to_ptr.vmem [resolvable:$true] %s672
          %675 = dma.hbm_to_vmem [thread:$0]  %s670, 16, %s673, %s663
        $region68: #{tpu_custom_call.1} parent=15 // pred_fallthru
          _
      $region16: #{tpu_custom_call.1} parent=5 // pred_fallthru
        _
      %p676 = scmp.le.s32.totalorder 1, %s44
      %p677 = scmp.lt.s32.totalorder %s44, 5
      %p678 = pnand %p676, %p677
      %p679 = pneg %p678
      // Predicated region
      $region69: #{tpu_custom_call.1} parent=5 // pred_check
        _
      $region70: #{tpu_custom_call.1} parent=5 // pred_check_branch
        %681 = sbr.rel (%p678) target = $region72
      $region71: #{tpu_custom_call.1} parent=5 // pred_region
        %s682 = ssub.s32 %s44, 1
        %s683 = sand.u32 %s69, 1
        %s684 = scalar_lea.sflag [#allocation4], %s683
        %s685 = sand.u32 %s69, 1
        %s686 = scalar_lea.vmem [#allocation3], %s685
        // Predicated region
        $region73: #{tpu_custom_call.1} parent=71 // pred_check
          %p687 = pneg %p82
        $region74: #{tpu_custom_call.1} parent=71 // pred_check_branch
          %689 = sbr.rel (%p687) target = $region76
        $region75: #{tpu_custom_call.1} parent=71 // pred_region
          %690 = dma.done %s684, 16
        $region76: #{tpu_custom_call.1} parent=71 // pred_fallthru
          _
        %s691 = sand.u32 %s49, 1
        %s692 = scalar_lea.sflag [#allocation7], %s691
        %s693 = sand.u32 %s95, 1
        %s694 = smul.addr %s693, 16
        %s695 = scalar_lea.vmem [#allocation6], %s694
        // Predicated region
        $region77: #{tpu_custom_call.1} parent=71 // pred_check
          %p696 = pneg %p108
        $region78: #{tpu_custom_call.1} parent=71 // pred_check_branch
          %698 = sbr.rel (%p696) target = $region80
        $region79: #{tpu_custom_call.1} parent=71 // pred_region
          %699 = dma.done %s692, 256
        $region80: #{tpu_custom_call.1} parent=71 // pred_fallthru
          _
        %s700 = sand.u32 %s49, 1
        %s701 = scalar_lea.sflag [#allocation7], %s700
        %s702 = sand.u32 %s121, 1
        %s703 = scalar_lea.vmem [#allocation8], %s702
        // Predicated region
        $region81: #{tpu_custom_call.1} parent=71 // pred_check
          %p704 = pneg %p134
        $region82: #{tpu_custom_call.1} parent=71 // pred_check_branch
          %706 = sbr.rel (%p704) target = $region84
        $region83: #{tpu_custom_call.1} parent=71 // pred_region
          %707 = dma.done %s701, 16
        $region84: #{tpu_custom_call.1} parent=71 // pred_fallthru
          _
        %s708 = sand.u32 %s49, 1
        %s709 = scalar_lea.sflag [#allocation10], %s708
        %s710 = sand.u32 %s147, 1
        %s711 = smul.addr %s710, 16
        %s712 = scalar_lea.vmem [#allocation9], %s711
        // Predicated region
        $region85: #{tpu_custom_call.1} parent=71 // pred_check
          %p713 = pneg %p160
        $region86: #{tpu_custom_call.1} parent=71 // pred_check_branch
          %715 = sbr.rel (%p713) target = $region88
        $region87: #{tpu_custom_call.1} parent=71 // pred_region
          %716 = dma.done %s709, 256
        $region88: #{tpu_custom_call.1} parent=71 // pred_fallthru
          _
        %s717 = sand.u32 %s49, 1
        %s718 = scalar_lea.sflag [#allocation10], %s717
        %s719 = sand.u32 %s173, 1
        %s720 = scalar_lea.vmem [#allocation11], %s719
        // Predicated region
        $region89: #{tpu_custom_call.1} parent=71 // pred_check
          %p721 = pneg %p186
        $region90: #{tpu_custom_call.1} parent=71 // pred_check_branch
          %723 = sbr.rel (%p721) target = $region92
        $region91: #{tpu_custom_call.1} parent=71 // pred_region
          %724 = dma.done %s718, 16
        $region92: #{tpu_custom_call.1} parent=71 // pred_fallthru
          _
        %s725 = sand.u32 %s49, 1
        %s726 = scalar_lea.sflag [#allocation13], %s725
        %s727 = sand.u32 %s199, 1
        %s728 = scalar_lea.vmem [#allocation12], %s727
        // Predicated region
        $region93: #{tpu_custom_call.1} parent=71 // pred_check
          %p729 = pneg %p212
        $region94: #{tpu_custom_call.1} parent=71 // pred_check_branch
          %731 = sbr.rel (%p729) target = $region96
        $region95: #{tpu_custom_call.1} parent=71 // pred_region
          %732 = dma.done %s726, 16
        $region96: #{tpu_custom_call.1} parent=71 // pred_fallthru
          _
        %s733 = sand.u32 %s49, 1
        %s734 = scalar_lea.sflag [#allocation13], %s733
        %s735 = sand.u32 %s225, 1
        %s736 = scalar_lea.vmem [#allocation14], %s735
        // Predicated region
        $region97: #{tpu_custom_call.1} parent=71 // pred_check
          %p737 = pneg %p238
        $region98: #{tpu_custom_call.1} parent=71 // pred_check_branch
          %739 = sbr.rel (%p737) target = $region100
        $region99: #{tpu_custom_call.1} parent=71 // pred_region
          %740 = dma.done %s734, 16
        $region100: #{tpu_custom_call.1} parent=71 // pred_fallthru
          _
        %s741 = sand.u32 %s49, 1
        %s742 = scalar_lea.sflag [#allocation16], %s741
        %s743 = sand.u32 %s251, 1
        %s744 = smul.addr %s743, 16
        %s745 = scalar_lea.vmem [#allocation15], %s744
        // Predicated region
        $region101: #{tpu_custom_call.1} parent=71 // pred_check
          %p746 = pneg %p264
        $region102: #{tpu_custom_call.1} parent=71 // pred_check_branch
          %748 = sbr.rel (%p746) target = $region104
        $region103: #{tpu_custom_call.1} parent=71 // pred_region
          %749 = dma.done %s742, 256
        $region104: #{tpu_custom_call.1} parent=71 // pred_fallthru
          _
        %s750 = sand.u32 %s49, 1
        %s751 = scalar_lea.sflag [#allocation16], %s750
        %s752 = sand.u32 %s277, 1
        %s753 = scalar_lea.vmem [#allocation17], %s752
        // Predicated region
        $region105: #{tpu_custom_call.1} parent=71 // pred_check
          %p754 = pneg %p290
        $region106: #{tpu_custom_call.1} parent=71 // pred_check_branch
          %756 = sbr.rel (%p754) target = $region108
        $region107: #{tpu_custom_call.1} parent=71 // pred_region
          %757 = dma.done %s751, 16
        $region108: #{tpu_custom_call.1} parent=71 // pred_fallthru
          _
        %s758 = sand.u32 %s49, 1
        %s759 = scalar_lea.sflag [#allocation19], %s758
        %s760 = sand.u32 %s303, 1
        %s761 = smul.addr %s760, 32
        %s762 = scalar_lea.vmem [#allocation18], %s761
        // Predicated region
        $region109: #{tpu_custom_call.1} parent=71 // pred_check
          %p763 = pneg %p316
        $region110: #{tpu_custom_call.1} parent=71 // pred_check_branch
          %765 = sbr.rel (%p763) target = $region112
        $region111: #{tpu_custom_call.1} parent=71 // pred_region
          %766 = dma.done %s759, 512
        $region112: #{tpu_custom_call.1} parent=71 // pred_fallthru
          _
        %s767 = sand.u32 %s49, 1
        %s768 = scalar_lea.sflag [#allocation19], %s767
        %s769 = sand.u32 %s329, 1
        %s770 = scalar_lea.vmem [#allocation20], %s769
        // Predicated region
        $region113: #{tpu_custom_call.1} parent=71 // pred_check
          %p771 = pneg %p342
        $region114: #{tpu_custom_call.1} parent=71 // pred_check_branch
          %773 = sbr.rel (%p771) target = $region116
        $region115: #{tpu_custom_call.1} parent=71 // pred_region
          %774 = dma.done %s768, 16
        $region116: #{tpu_custom_call.1} parent=71 // pred_fallthru
          _
        %s775 = sand.u32 %s49, 1
        %s776 = scalar_lea.sflag [#allocation22], %s775
        %s777 = sand.u32 %s355, 1
        %s778 = scalar_lea.vmem [#allocation21], %s777
        // Predicated region
        $region117: #{tpu_custom_call.1} parent=71 // pred_check
          %p779 = pneg %p368
        $region118: #{tpu_custom_call.1} parent=71 // pred_check_branch
          %781 = sbr.rel (%p779) target = $region120
        $region119: #{tpu_custom_call.1} parent=71 // pred_region
          %782 = dma.done %s776, 16
        $region120: #{tpu_custom_call.1} parent=71 // pred_fallthru
          _
        %s783 = sand.u32 %s49, 1
        %s784 = scalar_lea.sflag [#allocation22], %s783
        %s785 = sand.u32 %s381, 1
        %s786 = scalar_lea.vmem [#allocation23], %s785
        // Predicated region
        $region121: #{tpu_custom_call.1} parent=71 // pred_check
          %p787 = pneg %p394
        $region122: #{tpu_custom_call.1} parent=71 // pred_check_branch
          %789 = sbr.rel (%p787) target = $region124
        $region123: #{tpu_custom_call.1} parent=71 // pred_region
          %790 = dma.done %s784, 16
        $region124: #{tpu_custom_call.1} parent=71 // pred_fallthru
          _
        %s791 = sand.u32 %s69, 1
        %s792 = scalar_lea.sflag [#allocation4], %s791
        %s793 = sand.u32 %s69, 1
        %s794 = scalar_lea.vmem [#allocation3], %s793
        %p795 = pneg %p82
        %p796 = pneg %p79
        %s797 = sand.u32 %s49, 1
        %s798 = scalar_lea.sflag [#allocation7], %s797
        %s799 = sand.u32 %s95, 1
        %s800 = smul.addr %s799, 16
        %s801 = scalar_lea.vmem [#allocation6], %s800
        %p802 = pneg %p108
        %p803 = pneg %p105
        %s804 = sand.u32 %s49, 1
        %s805 = scalar_lea.sflag [#allocation7], %s804
        %s806 = sand.u32 %s121, 1
        %s807 = scalar_lea.vmem [#allocation8], %s806
        %p808 = pneg %p134
        %p809 = pneg %p131
        %s810 = sand.u32 %s49, 1
        %s811 = scalar_lea.sflag [#allocation10], %s810
        %s812 = sand.u32 %s147, 1
        %s813 = smul.addr %s812, 16
        %s814 = scalar_lea.vmem [#allocation9], %s813
        %p815 = pneg %p160
        %p816 = pneg %p157
        %s817 = sand.u32 %s49, 1
        %s818 = scalar_lea.sflag [#allocation10], %s817
        %s819 = sand.u32 %s173, 1
        %s820 = scalar_lea.vmem [#allocation11], %s819
        %p821 = pneg %p186
        %p822 = pneg %p183
        %s823 = sand.u32 %s49, 1
        %s824 = scalar_lea.sflag [#allocation13], %s823
        %s825 = sand.u32 %s199, 1
        %s826 = scalar_lea.vmem [#allocation12], %s825
        %p827 = pneg %p212
        %p828 = pneg %p209
        %s829 = sand.u32 %s49, 1
        %s830 = scalar_lea.sflag [#allocation13], %s829
        %s831 = sand.u32 %s225, 1
        %s832 = scalar_lea.vmem [#allocation14], %s831
        %p833 = pneg %p238
        %p834 = pneg %p235
        %s835 = sand.u32 %s49, 1
        %s836 = scalar_lea.sflag [#allocation16], %s835
        %s837 = sand.u32 %s251, 1
        %s838 = smul.addr %s837, 16
        %s839 = scalar_lea.vmem [#allocation15], %s838
        %p840 = pneg %p264
        %p841 = pneg %p261
        %s842 = sand.u32 %s49, 1
        %s843 = scalar_lea.sflag [#allocation16], %s842
        %s844 = sand.u32 %s277, 1
        %s845 = scalar_lea.vmem [#allocation17], %s844
        %p846 = pneg %p290
        %p847 = pneg %p287
        %s848 = sand.u32 %s49, 1
        %s849 = scalar_lea.sflag [#allocation19], %s848
        %s850 = sand.u32 %s303, 1
        %s851 = smul.addr %s850, 32
        %s852 = scalar_lea.vmem [#allocation18], %s851
        %p853 = pneg %p316
        %p854 = pneg %p313
        %s855 = sand.u32 %s49, 1
        %s856 = scalar_lea.sflag [#allocation19], %s855
        %s857 = sand.u32 %s329, 1
        %s858 = scalar_lea.vmem [#allocation20], %s857
        %p859 = pneg %p342
        %p860 = pneg %p339
        %s861 = sand.u32 %s49, 1
        %s862 = scalar_lea.sflag [#allocation22], %s861
        %s863 = sand.u32 %s355, 1
        %s864 = scalar_lea.vmem [#allocation21], %s863
        %p865 = pneg %p368
        %p866 = pneg %p365
        %s867 = sand.u32 %s49, 1
        %s868 = scalar_lea.sflag [#allocation22], %s867
        %s869 = sand.u32 %s381, 1
        %s870 = scalar_lea.vmem [#allocation23], %s869
        %p871 = pneg %p394
        %p872 = pneg %p391
        %p873 = pneg %p420
        %p874 = pneg %p417
        %s875 = sand.u32 %s407, 1
        %s876 = scalar_lea.sflag [#allocation5], %s875
        %s877 = sand.u32 %s407, 1
        %s878 = smul.addr %s877, 8
        %s879 = scalar_lea.vmem [#allocation24], %s878
        %p881 = scmp.eq.s32.totalorder %s54, 0
        // Predicated region
        $region125: #{tpu_custom_call.1} parent=71 // pred_check
          %p882 = pneg %p881
        $region126: #{tpu_custom_call.1} parent=71 // pred_check_branch
          %884 = sbr.rel (%p882) target = $region128
        $region127: #{tpu_custom_call.1} parent=71 // pred_region
          %s885 = smul.u32 %s53, 8
          %s886 = smul.addr %s885, 16
          %s887 = scalar_lea.hbm %s0, %s886
          // Predicated region
          $region129: #{tpu_custom_call.1} parent=127 // pred_check
            _
          $region130: #{tpu_custom_call.1} parent=127 // pred_check_branch
            %889 = sbr.rel target = $region132
          $region131: #{tpu_custom_call.1} parent=127 // pred_region
            %890 = sst [smem:[#allocation27]] [#allocation26]
            %891 = sst [smem:[#allocation28]] [#allocation25]
          $region132: #{tpu_custom_call.1} parent=127 // pred_fallthru
            _
          %893 = shalt.err (0)
          %s895 = sshll.u32 %s879, 4
          %s896 = int_to_ptr.vmem [resolvable:$true] %s895
          %898 = dma.hbm_to_vmem [thread:$0]  %s887, 128, %s896, [#allocation2]
          %s899 = smul.u32 8, 1
          %s900 = sshll.u32 %s899, 4
          %901 = dma.done [#allocation2], %s900
        $region128: #{tpu_custom_call.1} parent=71 // pred_fallthru
          _
        %v902 = vld [vmem:[%s879] sm:$0xff]
        %v903 = vpack.c.bf16 %v902, %v902
        %v904 = vld [vmem:[%s695] sm:$0xf]
        %v905 = vld [vmem:[%s695 + $0x4] sm:$0xf]
        %v906 = vld [vmem:[%s695 + $0x8] sm:$0xf]
        %v907 = vld [vmem:[%s695 + $0xc] sm:$0xf]
        %v908 = vld [vmem:[%s703] sm:$0x1]
        %v910 = vlaneseq
        %v911 = vshrl.u32 %v910, 7
        %v912 = vsub.s32 0, %v911
        %v913 = vrot.slane %v908, %v912
        %v919 = vunpack.c.l.b16 %v904
        %v920 = vunpack.c.l.b16 %v905
        %v921 = vunpack.c.l.b16 %v906
        %v922 = vunpack.c.l.b16 %v907
        %v923 = vpack.c.b16 %v920, %v919
        %v924 = vpack.c.b16 %v922, %v921
        %vm927 = vcmask 261120
        %v929 = vsel %vm927, %v903, 0
        %931 = vmatprep.subr.bf16.mxu0 0
        %932 = vmatpush1.bf16.msra.mxu0 %v923
        %933 = vmatprep.subr.bf16.mxu0 0
        %934 = vmatpush1.bf16.msra.mxu0 %v924
        %935 = vmatprep.subr.bf16.mxu0 0
        %936 = vmatpush1.bf16.msra.mxu0 0
        %937 = vmatprep.subr.bf16.mxu0 0
        %938 = vmatpush1.bf16.msra.mxu0 0
        %939 = vmatprep.subr.bf16.mxu0 0
        %940 = vmatpush1.bf16.msra.mxu0 0
        %941 = vmatprep.subr.bf16.mxu0 0
        %942 = vmatpush1.bf16.msra.mxu0 0
        %943 = vmatprep.subr.bf16.mxu0 0
        %944 = vmatpush1.bf16.msra.mxu0 0
        %945 = vmatprep.subr.bf16.mxu0 0
        %946 = vmatpush1.bf16.msra.mxu0 0
        %947 = vmatprep.subr.bf16.mxu0 0
        %948 = vmatpush1.bf16.msra.mxu0 0
        %949 = vmatprep.subr.bf16.mxu0 0
        %950 = vmatpush1.bf16.msra.mxu0 0
        %951 = vmatprep.subr.bf16.mxu0 0
        %952 = vmatpush1.bf16.msra.mxu0 0
        %953 = vmatprep.subr.bf16.mxu0 0
        %954 = vmatpush1.bf16.msra.mxu0 0
        %955 = vmatprep.subr.bf16.mxu0 0
        %956 = vmatpush1.bf16.msra.mxu0 0
        %957 = vmatprep.subr.bf16.mxu0 0
        %958 = vmatpush1.bf16.msra.mxu0 0
        %959 = vmatprep.subr.bf16.mxu0 0
        %960 = vmatpush1.bf16.msra.mxu0 0
        %961 = vmatprep.subr.bf16.mxu0 0
        %962 = vmatpush1.bf16.msra.mxu0 0
        %963 = vmatprep.mubr.bf16.mxu0 0
        %964 = vmatmul.mubr.bf16.gmra.mrb[0].mxu0 %v929
        %v965 = vpop.f32.mrb[0].mxu0
        %v966 = vadd.f32 %v913, %v965
        %v967 = vpop.f32.mrb[0].mxu0
        %v968 = vpop.f32.mrb[0].mxu0
        %v969 = vpop.f32.mrb[0].mxu0
        %970 = vdwg.mxu0
        %972 = vrot.lane.b32.xlu0 %v966, 104
        %v973 = vpop.permute.xlu0 %972
        %975 = vrot.lane.b32.xlu0 %v966, 80
        %v976 = vpop.permute.xlu0 %975
        %978 = vrot.lane.b32.xlu0 %v966, 56
        %v979 = vpop.permute.xlu0 %978
        %v981 = vpack.c.bf16 %v966, %v966
        %v982 = vpack.c.bf16 %v973, %v973
        %v983 = vpack.c.bf16 %v976, %v976
        %v984 = vpack.c.bf16 %v979, %v979
        %986 = vrot.lane.b32.xlu0 %v981, 120
        %v987 = vpop.permute.xlu0 %986
        %vm988 = vcmask 64512
        %v990 = vsel %vm988, %v981, 0
        %v993 = vsel %vm988, %v987, 0
        %995 = vmatprep.subr.bf16.mxu0 0
        %996 = vmatpush1.bf16.xpose.msra.mxu0 %v993
        %997 = vmatprep.subr.bf16.mxu0 0
        %998 = vmatpush1.bf16.xpose.msra.mxu0 0
        %999 = vmatprep.subr.bf16.mxu0 0
        %1000 = vmatpush1.bf16.xpose.msra.mxu0 0
        %1001 = vmatprep.subr.bf16.mxu0 0
        %1002 = vmatpush1.bf16.xpose.msra.mxu0 0
        %1003 = vmatprep.subr.bf16.mxu0 0
        %1004 = vmatpush1.bf16.xpose.msra.mxu0 0
        %1005 = vmatprep.subr.bf16.mxu0 0
        %1006 = vmatpush1.bf16.xpose.msra.mxu0 0
        %1007 = vmatprep.subr.bf16.mxu0 0
        %1008 = vmatpush1.bf16.xpose.msra.mxu0 0
        %1009 = vmatprep.subr.bf16.mxu0 0
        %1010 = vmatpush1.bf16.xpose.msra.mxu0 0
        %1011 = vmatprep.subr.bf16.mxu0 0
        %1012 = vmatpush1.bf16.xpose.msra.mxu0 0
        %1013 = vmatprep.subr.bf16.mxu0 0
        %1014 = vmatpush1.bf16.xpose.msra.mxu0 0
        %1015 = vmatprep.subr.bf16.mxu0 0
        %1016 = vmatpush1.bf16.xpose.msra.mxu0 0
        %1017 = vmatprep.subr.bf16.mxu0 0
        %1018 = vmatpush1.bf16.xpose.msra.mxu0 0
        %1019 = vmatprep.subr.bf16.mxu0 0
        %1020 = vmatpush1.bf16.xpose.msra.mxu0 0
        %1021 = vmatprep.subr.bf16.mxu0 0
        %1022 = vmatpush1.bf16.xpose.msra.mxu0 0
        %1023 = vmatprep.subr.bf16.mxu0 0
        %1024 = vmatpush1.bf16.xpose.msra.mxu0 0
        %1025 = vmatprep.subr.bf16.mxu0 0
        %1026 = vmatpush1.bf16.xpose.msra.mxu0 0
        %1027 = vmatprep.mubr.bf16.mxu0 0
        %1028 = vmatmul.mubr.bf16.gmra.mrb[0].mxu0 %v990
        %v1029 = vpop.f32.mrb[0].mxu0
        %v1030 = vadd.f32 0.0, %v1029
        %v1031 = vpop.f32.mrb[0].mxu0
        %v1032 = vpop.f32.mrb[0].mxu0
        %v1033 = vpop.f32.mrb[0].mxu0
        %1034 = vdwg.mxu0
        %1036 = vrot.lane.b32.xlu0 %v982, 120
        %v1037 = vpop.permute.xlu0 %1036
        %v1039 = vsel %vm988, %v982, 0
        %v1042 = vsel %vm988, %v1037, 0
        %1044 = vmatprep.subr.bf16.mxu0 0
        %1045 = vmatpush1.bf16.xpose.msra.mxu0 %v1042
        %1046 = vmatprep.subr.bf16.mxu0 0
        %1047 = vmatpush1.bf16.xpose.msra.mxu0 0
        %1048 = vmatprep.subr.bf16.mxu0 0
        %1049 = vmatpush1.bf16.xpose.msra.mxu0 0
        %1050 = vmatprep.subr.bf16.mxu0 0
        %1051 = vmatpush1.bf16.xpose.msra.mxu0 0
        %1052 = vmatprep.subr.bf16.mxu0 0
        %1053 = vmatpush1.bf16.xpose.msra.mxu0 0
        %1054 = vmatprep.subr.bf16.mxu0 0
        %1055 = vmatpush1.bf16.xpose.msra.mxu0 0
        %1056 = vmatprep.subr.bf16.mxu0 0
        %1057 = vmatpush1.bf16.xpose.msra.mxu0 0
        %1058 = vmatprep.subr.bf16.mxu0 0
        %1059 = vmatpush1.bf16.xpose.msra.mxu0 0
        %1060 = vmatprep.subr.bf16.mxu0 0
        %1061 = vmatpush1.bf16.xpose.msra.mxu0 0
        %1062 = vmatprep.subr.bf16.mxu0 0
        %1063 = vmatpush1.bf16.xpose.msra.mxu0 0
        %1064 = vmatprep.subr.bf16.mxu0 0
        %1065 = vmatpush1.bf16.xpose.msra.mxu0 0
        %1066 = vmatprep.subr.bf16.mxu0 0
        %1067 = vmatpush1.bf16.xpose.msra.mxu0 0
        %1068 = vmatprep.subr.bf16.mxu0 0
        %1069 = vmatpush1.bf16.xpose.msra.mxu0 0
        %1070 = vmatprep.subr.bf16.mxu0 0
        %1071 = vmatpush1.bf16.xpose.msra.mxu0 0
        %1072 = vmatprep.subr.bf16.mxu0 0
        %1073 = vmatpush1.bf16.xpose.msra.mxu0 0
        %1074 = vmatprep.subr.bf16.mxu0 0
        %1075 = vmatpush1.bf16.xpose.msra.mxu0 0
        %1076 = vmatprep.mubr.bf16.mxu0 0
        %1077 = vmatmul.mubr.bf16.gmra.mrb[0].mxu0 %v1039
        %v1078 = vpop.f32.mrb[0].mxu0
        %v1079 = vadd.f32 0.0, %v1078
        %v1080 = vpop.f32.mrb[0].mxu0
        %v1081 = vpop.f32.mrb[0].mxu0
        %v1082 = vpop.f32.mrb[0].mxu0
        %1083 = vdwg.mxu0
        %1085 = vrot.lane.b32.xlu0 %v983, 120
        %v1086 = vpop.permute.xlu0 %1085
        %v1088 = vsel %vm988, %v983, 0
        %v1091 = vsel %vm988, %v1086, 0
        %1093 = vmatprep.subr.bf16.mxu0 0
        %1094 = vmatpush1.bf16.xpose.msra.mxu0 %v1091
        %1095 = vmatprep.subr.bf16.mxu0 0
        %1096 = vmatpush1.bf16.xpose.msra.mxu0 0
        %1097 = vmatprep.subr.bf16.mxu0 0
        %1098 = vmatpush1.bf16.xpose.msra.mxu0 0
        %1099 = vmatprep.subr.bf16.mxu0 0
        %1100 = vmatpush1.bf16.xpose.msra.mxu0 0
        %1101 = vmatprep.subr.bf16.mxu0 0
        %1102 = vmatpush1.bf16.xpose.msra.mxu0 0
        %1103 = vmatprep.subr.bf16.mxu0 0
        %1104 = vmatpush1.bf16.xpose.msra.mxu0 0
        %1105 = vmatprep.subr.bf16.mxu0 0
        %1106 = vmatpush1.bf16.xpose.msra.mxu0 0
        %1107 = vmatprep.subr.bf16.mxu0 0
        %1108 = vmatpush1.bf16.xpose.msra.mxu0 0
        %1109 = vmatprep.subr.bf16.mxu0 0
        %1110 = vmatpush1.bf16.xpose.msra.mxu0 0
        %1111 = vmatprep.subr.bf16.mxu0 0
        %1112 = vmatpush1.bf16.xpose.msra.mxu0 0
        %1113 = vmatprep.subr.bf16.mxu0 0
        %1114 = vmatpush1.bf16.xpose.msra.mxu0 0
        %1115 = vmatprep.subr.bf16.mxu0 0
        %1116 = vmatpush1.bf16.xpose.msra.mxu0 0
        %1117 = vmatprep.subr.bf16.mxu0 0
        %1118 = vmatpush1.bf16.xpose.msra.mxu0 0
        %1119 = vmatprep.subr.bf16.mxu0 0
        %1120 = vmatpush1.bf16.xpose.msra.mxu0 0
        %1121 = vmatprep.subr.bf16.mxu0 0
        %1122 = vmatpush1.bf16.xpose.msra.mxu0 0
        %1123 = vmatprep.subr.bf16.mxu0 0
        %1124 = vmatpush1.bf16.xpose.msra.mxu0 0
        %1125 = vmatprep.mubr.bf16.mxu0 0
        %1126 = vmatmul.mubr.bf16.gmra.mrb[0].mxu0 %v1088
        %v1127 = vpop.f32.mrb[0].mxu0
        %v1128 = vadd.f32 0.0, %v1127
        %v1129 = vpop.f32.mrb[0].mxu0
        %v1130 = vpop.f32.mrb[0].mxu0
        %v1131 = vpop.f32.mrb[0].mxu0
        %1132 = vdwg.mxu0
        %1134 = vrot.lane.b32.xlu0 %v984, 120
        %v1135 = vpop.permute.xlu0 %1134
        %v1137 = vsel %vm988, %v984, 0
        %v1140 = vsel %vm988, %v1135, 0
        %1142 = vmatprep.subr.bf16.mxu0 0
        %1143 = vmatpush1.bf16.xpose.msra.mxu0 %v1140
        %1144 = vmatprep.subr.bf16.mxu0 0
        %1145 = vmatpush1.bf16.xpose.msra.mxu0 0
        %1146 = vmatprep.subr.bf16.mxu0 0
        %1147 = vmatpush1.bf16.xpose.msra.mxu0 0
        %1148 = vmatprep.subr.bf16.mxu0 0
        %1149 = vmatpush1.bf16.xpose.msra.mxu0 0
        %1150 = vmatprep.subr.bf16.mxu0 0
        %1151 = vmatpush1.bf16.xpose.msra.mxu0 0
        %1152 = vmatprep.subr.bf16.mxu0 0
        %1153 = vmatpush1.bf16.xpose.msra.mxu0 0
        %1154 = vmatprep.subr.bf16.mxu0 0
        %1155 = vmatpush1.bf16.xpose.msra.mxu0 0
        %1156 = vmatprep.subr.bf16.mxu0 0
        %1157 = vmatpush1.bf16.xpose.msra.mxu0 0
        %1158 = vmatprep.subr.bf16.mxu0 0
        %1159 = vmatpush1.bf16.xpose.msra.mxu0 0
        %1160 = vmatprep.subr.bf16.mxu0 0
        %1161 = vmatpush1.bf16.xpose.msra.mxu0 0
        %1162 = vmatprep.subr.bf16.mxu0 0
        %1163 = vmatpush1.bf16.xpose.msra.mxu0 0
        %1164 = vmatprep.subr.bf16.mxu0 0
        %1165 = vmatpush1.bf16.xpose.msra.mxu0 0
        %1166 = vmatprep.subr.bf16.mxu0 0
        %1167 = vmatpush1.bf16.xpose.msra.mxu0 0
        %1168 = vmatprep.subr.bf16.mxu0 0
        %1169 = vmatpush1.bf16.xpose.msra.mxu0 0
        %1170 = vmatprep.subr.bf16.mxu0 0
        %1171 = vmatpush1.bf16.xpose.msra.mxu0 0
        %1172 = vmatprep.subr.bf16.mxu0 0
        %1173 = vmatpush1.bf16.xpose.msra.mxu0 0
        %1174 = vmatprep.mubr.bf16.mxu0 0
        %1175 = vmatmul.mubr.bf16.gmra.mrb[0].mxu0 %v1137
        %v1176 = vpop.f32.mrb[0].mxu0
        %v1177 = vadd.f32 0.0, %v1176
        %v1178 = vpop.f32.mrb[0].mxu0
        %v1179 = vpop.f32.mrb[0].mxu0
        %v1180 = vpop.f32.mrb[0].mxu0
        %1181 = vdwg.mxu0
        %v1182 = vld [vmem:[%s686] sm:$0x1]
        %v1184 = vlaneseq
        %v1185 = vshrl.u32 %v1184, 7
        %v1186 = vsub.s32 0, %v1185
        %v1187 = vrot.slane %v1182, %v1186
        %v1189 = vadd.f32 %v1030, %v1187
        %v1190 = vadd.f32 %v1079, %v1187
        %v1191 = vadd.f32 %v1128, %v1187
        %v1192 = vadd.f32 %v1177, %v1187
        %v1193 = vsel %vm988, %v1189, -inf
        %1194 = vmax.xlane.f32.xlu0 %v1193
        %v1195 = vpop.xlane.xlu0 %1194
        %v1196 = vsel %vm988, %v1190, -inf
        %1197 = vmax.xlane.f32.xlu0 %v1196
        %v1198 = vpop.xlane.xlu0 %1197
        %v1199 = vsel %vm988, %v1191, -inf
        %1200 = vmax.xlane.f32.xlu0 %v1199
        %v1201 = vpop.xlane.xlu0 %1200
        %v1202 = vsel %vm988, %v1192, -inf
        %1203 = vmax.xlane.f32.xlu0 %v1202
        %v1204 = vpop.xlane.xlu0 %1203
        %v1205 = vsub.f32 %v1189, %v1195
        %v1206 = vsub.f32 %v1190, %v1198
        %v1207 = vsub.f32 %v1191, %v1201
        %v1208 = vsub.f32 %v1192, %v1204
        %v1209 = vmul.f32 %v1205, 1.442695
        %v1210 = vpow.pop %v1209
        %v1211 = vmul.f32 %v1206, 1.442695
        %v1212 = vpow.pop %v1211
        %v1213 = vmul.f32 %v1207, 1.442695
        %v1214 = vpow.pop %v1213
        %v1215 = vmul.f32 %v1208, 1.442695
        %v1216 = vpow.pop %v1215
        %v1217 = vsel %vm988, %v1210, 0.0
        %1218 = vadd.xlane.f32.xlu0 %v1217
        %v1219 = vpop.xlane.xlu0 %1218
        %v1220 = vsel %vm988, %v1212, 0.0
        %1221 = vadd.xlane.f32.xlu0 %v1220
        %v1222 = vpop.xlane.xlu0 %1221
        %v1223 = vsel %vm988, %v1214, 0.0
        %1224 = vadd.xlane.f32.xlu0 %v1223
        %v1225 = vpop.xlane.xlu0 %1224
        %v1226 = vsel %vm988, %v1216, 0.0
        %1227 = vadd.xlane.f32.xlu0 %v1226
        %v1228 = vpop.xlane.xlu0 %1227
        %v1229 = vrcp.pop %v1219
        %v1230 = vrcp.pop %v1222
        %v1231 = vrcp.pop %v1225
        %v1232 = vrcp.pop %v1228
        %v1233 = vmul.f32 %v1210, %v1229
        %v1234 = vmul.f32 %v1212, %v1230
        %v1235 = vmul.f32 %v1214, %v1231
        %v1236 = vmul.f32 %v1216, %v1232
        %v1237 = vpack.c.bf16 %v1233, %v1233
        %v1238 = vpack.c.bf16 %v1234, %v1234
        %v1239 = vpack.c.bf16 %v1235, %v1235
        %v1240 = vpack.c.bf16 %v1236, %v1236
        %1241 = vrot.lane.b32.xlu0 %v981, 112
        %v1242 = vpop.permute.xlu0 %1241
        %v1244 = vsel %vm988, %v1237, 0
        %vm1246 = vcmask 1043456
        %v1248 = vsel %vm1246, %v1242, 0
        %1250 = vmatprep.subr.bf16.mxu0 0
        %1251 = vmatpush1.bf16.msra.mxu0 %v1248
        %1252 = vmatprep.subr.bf16.mxu0 0
        %1253 = vmatpush1.bf16.msra.mxu0 0
        %1254 = vmatprep.subr.bf16.mxu0 0
        %1255 = vmatpush1.bf16.msra.mxu0 0
        %1256 = vmatprep.subr.bf16.mxu0 0
        %1257 = vmatpush1.bf16.msra.mxu0 0
        %1258 = vmatprep.subr.bf16.mxu0 0
        %1259 = vmatpush1.bf16.msra.mxu0 0
        %1260 = vmatprep.subr.bf16.mxu0 0
        %1261 = vmatpush1.bf16.msra.mxu0 0
        %1262 = vmatprep.subr.bf16.mxu0 0
        %1263 = vmatpush1.bf16.msra.mxu0 0
        %1264 = vmatprep.subr.bf16.mxu0 0
        %1265 = vmatpush1.bf16.msra.mxu0 0
        %1266 = vmatprep.subr.bf16.mxu0 0
        %1267 = vmatpush1.bf16.msra.mxu0 0
        %1268 = vmatprep.subr.bf16.mxu0 0
        %1269 = vmatpush1.bf16.msra.mxu0 0
        %1270 = vmatprep.subr.bf16.mxu0 0
        %1271 = vmatpush1.bf16.msra.mxu0 0
        %1272 = vmatprep.subr.bf16.mxu0 0
        %1273 = vmatpush1.bf16.msra.mxu0 0
        %1274 = vmatprep.subr.bf16.mxu0 0
        %1275 = vmatpush1.bf16.msra.mxu0 0
        %1276 = vmatprep.subr.bf16.mxu0 0
        %1277 = vmatpush1.bf16.msra.mxu0 0
        %1278 = vmatprep.subr.bf16.mxu0 0
        %1279 = vmatpush1.bf16.msra.mxu0 0
        %1280 = vmatprep.subr.bf16.mxu0 0
        %1281 = vmatpush1.bf16.msra.mxu0 0
        %1282 = vmatprep.mubr.bf16.mxu0 0
        %1283 = vmatmul.mubr.bf16.gmra.mrb[0].mxu0 %v1244
        %v1284 = vpop.f32.mrb[0].mxu0
        %v1285 = vadd.f32 0.0, %v1284
        %v1286 = vpop.f32.mrb[0].mxu0
        %v1287 = vpop.f32.mrb[0].mxu0
        %v1288 = vpop.f32.mrb[0].mxu0
        %1289 = vdwg.mxu0
        %1290 = vrot.lane.b32.xlu0 %v982, 112
        %v1291 = vpop.permute.xlu0 %1290
        %v1293 = vsel %vm988, %v1238, 0
        %v1296 = vsel %vm1246, %v1291, 0
        %1298 = vmatprep.subr.bf16.mxu0 0
        %1299 = vmatpush1.bf16.msra.mxu0 %v1296
        %1300 = vmatprep.subr.bf16.mxu0 0
        %1301 = vmatpush1.bf16.msra.mxu0 0
        %1302 = vmatprep.subr.bf16.mxu0 0
        %1303 = vmatpush1.bf16.msra.mxu0 0
        %1304 = vmatprep.subr.bf16.mxu0 0
        %1305 = vmatpush1.bf16.msra.mxu0 0
        %1306 = vmatprep.subr.bf16.mxu0 0
        %1307 = vmatpush1.bf16.msra.mxu0 0
        %1308 = vmatprep.subr.bf16.mxu0 0
        %1309 = vmatpush1.bf16.msra.mxu0 0
        %1310 = vmatprep.subr.bf16.mxu0 0
        %1311 = vmatpush1.bf16.msra.mxu0 0
        %1312 = vmatprep.subr.bf16.mxu0 0
        %1313 = vmatpush1.bf16.msra.mxu0 0
        %1314 = vmatprep.subr.bf16.mxu0 0
        %1315 = vmatpush1.bf16.msra.mxu0 0
        %1316 = vmatprep.subr.bf16.mxu0 0
        %1317 = vmatpush1.bf16.msra.mxu0 0
        %1318 = vmatprep.subr.bf16.mxu0 0
        %1319 = vmatpush1.bf16.msra.mxu0 0
        %1320 = vmatprep.subr.bf16.mxu0 0
        %1321 = vmatpush1.bf16.msra.mxu0 0
        %1322 = vmatprep.subr.bf16.mxu0 0
        %1323 = vmatpush1.bf16.msra.mxu0 0
        %1324 = vmatprep.subr.bf16.mxu0 0
        %1325 = vmatpush1.bf16.msra.mxu0 0
        %1326 = vmatprep.subr.bf16.mxu0 0
        %1327 = vmatpush1.bf16.msra.mxu0 0
        %1328 = vmatprep.subr.bf16.mxu0 0
        %1329 = vmatpush1.bf16.msra.mxu0 0
        %1330 = vmatprep.mubr.bf16.mxu0 0
        %1331 = vmatmul.mubr.bf16.gmra.mrb[0].mxu0 %v1293
        %v1332 = vpop.f32.mrb[0].mxu0
        %v1333 = vadd.f32 0.0, %v1332
        %v1334 = vpop.f32.mrb[0].mxu0
        %v1335 = vpop.f32.mrb[0].mxu0
        %v1336 = vpop.f32.mrb[0].mxu0
        %1337 = vdwg.mxu0
        %1338 = vrot.lane.b32.xlu0 %v983, 112
        %v1339 = vpop.permute.xlu0 %1338
        %v1341 = vsel %vm988, %v1239, 0
        %v1344 = vsel %vm1246, %v1339, 0
        %1346 = vmatprep.subr.bf16.mxu0 0
        %1347 = vmatpush1.bf16.msra.mxu0 %v1344
        %1348 = vmatprep.subr.bf16.mxu0 0
        %1349 = vmatpush1.bf16.msra.mxu0 0
        %1350 = vmatprep.subr.bf16.mxu0 0
        %1351 = vmatpush1.bf16.msra.mxu0 0
        %1352 = vmatprep.subr.bf16.mxu0 0
        %1353 = vmatpush1.bf16.msra.mxu0 0
        %1354 = vmatprep.subr.bf16.mxu0 0
        %1355 = vmatpush1.bf16.msra.mxu0 0
        %1356 = vmatprep.subr.bf16.mxu0 0
        %1357 = vmatpush1.bf16.msra.mxu0 0
        %1358 = vmatprep.subr.bf16.mxu0 0
        %1359 = vmatpush1.bf16.msra.mxu0 0
        %1360 = vmatprep.subr.bf16.mxu0 0
        %1361 = vmatpush1.bf16.msra.mxu0 0
        %1362 = vmatprep.subr.bf16.mxu0 0
        %1363 = vmatpush1.bf16.msra.mxu0 0
        %1364 = vmatprep.subr.bf16.mxu0 0
        %1365 = vmatpush1.bf16.msra.mxu0 0
        %1366 = vmatprep.subr.bf16.mxu0 0
        %1367 = vmatpush1.bf16.msra.mxu0 0
        %1368 = vmatprep.subr.bf16.mxu0 0
        %1369 = vmatpush1.bf16.msra.mxu0 0
        %1370 = vmatprep.subr.bf16.mxu0 0
        %1371 = vmatpush1.bf16.msra.mxu0 0
        %1372 = vmatprep.subr.bf16.mxu0 0
        %1373 = vmatpush1.bf16.msra.mxu0 0
        %1374 = vmatprep.subr.bf16.mxu0 0
        %1375 = vmatpush1.bf16.msra.mxu0 0
        %1376 = vmatprep.subr.bf16.mxu0 0
        %1377 = vmatpush1.bf16.msra.mxu0 0
        %1378 = vmatprep.mubr.bf16.mxu0 0
        %1379 = vmatmul.mubr.bf16.gmra.mrb[0].mxu0 %v1341
        %v1380 = vpop.f32.mrb[0].mxu0
        %v1381 = vadd.f32 0.0, %v1380
        %v1382 = vpop.f32.mrb[0].mxu0
        %v1383 = vpop.f32.mrb[0].mxu0
        %v1384 = vpop.f32.mrb[0].mxu0
        %1385 = vdwg.mxu0
        %1386 = vrot.lane.b32.xlu0 %v984, 112
        %v1387 = vpop.permute.xlu0 %1386
        %v1389 = vsel %vm988, %v1240, 0
        %v1392 = vsel %vm1246, %v1387, 0
        %1394 = vmatprep.subr.bf16.mxu0 0
        %1395 = vmatpush1.bf16.msra.mxu0 %v1392
        %1396 = vmatprep.subr.bf16.mxu0 0
        %1397 = vmatpush1.bf16.msra.mxu0 0
        %1398 = vmatprep.subr.bf16.mxu0 0
        %1399 = vmatpush1.bf16.msra.mxu0 0
        %1400 = vmatprep.subr.bf16.mxu0 0
        %1401 = vmatpush1.bf16.msra.mxu0 0
        %1402 = vmatprep.subr.bf16.mxu0 0
        %1403 = vmatpush1.bf16.msra.mxu0 0
        %1404 = vmatprep.subr.bf16.mxu0 0
        %1405 = vmatpush1.bf16.msra.mxu0 0
        %1406 = vmatprep.subr.bf16.mxu0 0
        %1407 = vmatpush1.bf16.msra.mxu0 0
        %1408 = vmatprep.subr.bf16.mxu0 0
        %1409 = vmatpush1.bf16.msra.mxu0 0
        %1410 = vmatprep.subr.bf16.mxu0 0
        %1411 = vmatpush1.bf16.msra.mxu0 0
        %1412 = vmatprep.subr.bf16.mxu0 0
        %1413 = vmatpush1.bf16.msra.mxu0 0
        %1414 = vmatprep.subr.bf16.mxu0 0
        %1415 = vmatpush1.bf16.msra.mxu0 0
        %1416 = vmatprep.subr.bf16.mxu0 0
        %1417 = vmatpush1.bf16.msra.mxu0 0
        %1418 = vmatprep.subr.bf16.mxu0 0
        %1419 = vmatpush1.bf16.msra.mxu0 0
        %1420 = vmatprep.subr.bf16.mxu0 0
        %1421 = vmatpush1.bf16.msra.mxu0 0
        %1422 = vmatprep.subr.bf16.mxu0 0
        %1423 = vmatpush1.bf16.msra.mxu0 0
        %1424 = vmatprep.subr.bf16.mxu0 0
        %1425 = vmatpush1.bf16.msra.mxu0 0
        %1426 = vmatprep.mubr.bf16.mxu0 0
        %1427 = vmatmul.mubr.bf16.gmra.mrb[0].mxu0 %v1389
        %v1428 = vpop.f32.mrb[0].mxu0
        %v1429 = vadd.f32 0.0, %v1428
        %v1430 = vpop.f32.mrb[0].mxu0
        %v1431 = vpop.f32.mrb[0].mxu0
        %v1432 = vpop.f32.mrb[0].mxu0
        %1433 = vdwg.mxu0
        %1435 = vrot.lane.b32.xlu0 %v1333, 8
        %v1436 = vpop.permute.xlu0 %1435
        %1439 = vrot.lane.b32.xlu0 %v1381, 16
        %v1440 = vpop.permute.xlu0 %1439
        %1443 = vrot.lane.b32.xlu0 %v1429, 24
        %v1444 = vpop.permute.xlu0 %1443
        %v1446 = vsel %vm988, %v1285, %v1436
        %vm1447 = vcmask 130048
        %v1448 = vsel %vm1447, %v1446, %v1440
        %vm1449 = vcmask 195584
        %v1450 = vsel %vm1449, %v1448, %v1444
        %v1451 = vpack.c.bf16 %v1450, %v1450
        %v1452 = vld [vmem:[%s712] sm:$0xf]
        %v1453 = vld [vmem:[%s712 + $0x4] sm:$0xf]
        %v1454 = vld [vmem:[%s712 + $0x8] sm:$0xf]
        %v1455 = vld [vmem:[%s712 + $0xc] sm:$0xf]
        %v1456 = vld [vmem:[%s720] sm:$0x1]
        %v1458 = vlaneseq
        %v1459 = vshrl.u32 %v1458, 7
        %v1460 = vsub.s32 0, %v1459
        %v1461 = vrot.slane %v1456, %v1460
        %v1467 = vunpack.c.l.b16 %v1452
        %v1468 = vunpack.c.l.b16 %v1453
        %v1469 = vunpack.c.l.b16 %v1454
        %v1470 = vunpack.c.l.b16 %v1455
        %v1471 = vpack.c.b16 %v1468, %v1467
        %v1472 = vpack.c.b16 %v1470, %v1469
        %v1476 = vsel %vm927, %v1451, 0
        %1478 = vmatprep.subr.bf16.mxu0 0
        %1479 = vmatpush1.bf16.msra.mxu0 %v1471
        %1480 = vmatprep.subr.bf16.mxu0 0
        %1481 = vmatpush1.bf16.msra.mxu0 %v1472
        %1482 = vmatprep.subr.bf16.mxu0 0
        %1483 = vmatpush1.bf16.msra.mxu0 0
        %1484 = vmatprep.subr.bf16.mxu0 0
        %1485 = vmatpush1.bf16.msra.mxu0 0
        %1486 = vmatprep.subr.bf16.mxu0 0
        %1487 = vmatpush1.bf16.msra.mxu0 0
        %1488 = vmatprep.subr.bf16.mxu0 0
        %1489 = vmatpush1.bf16.msra.mxu0 0
        %1490 = vmatprep.subr.bf16.mxu0 0
        %1491 = vmatpush1.bf16.msra.mxu0 0
        %1492 = vmatprep.subr.bf16.mxu0 0
        %1493 = vmatpush1.bf16.msra.mxu0 0
        %1494 = vmatprep.subr.bf16.mxu0 0
        %1495 = vmatpush1.bf16.msra.mxu0 0
        %1496 = vmatprep.subr.bf16.mxu0 0
        %1497 = vmatpush1.bf16.msra.mxu0 0
        %1498 = vmatprep.subr.bf16.mxu0 0
        %1499 = vmatpush1.bf16.msra.mxu0 0
        %1500 = vmatprep.subr.bf16.mxu0 0
        %1501 = vmatpush1.bf16.msra.mxu0 0
        %1502 = vmatprep.subr.bf16.mxu0 0
        %1503 = vmatpush1.bf16.msra.mxu0 0
        %1504 = vmatprep.subr.bf16.mxu0 0
        %1505 = vmatpush1.bf16.msra.mxu0 0
        %1506 = vmatprep.subr.bf16.mxu0 0
        %1507 = vmatpush1.bf16.msra.mxu0 0
        %1508 = vmatprep.subr.bf16.mxu0 0
        %1509 = vmatpush1.bf16.msra.mxu0 0
        %1510 = vmatprep.mubr.bf16.mxu0 0
        %1511 = vmatmul.mubr.bf16.gmra.mrb[0].mxu0 %v1476
        %v1512 = vpop.f32.mrb[0].mxu0
        %v1513 = vadd.f32 %v1461, %v1512
        %v1514 = vpop.f32.mrb[0].mxu0
        %v1515 = vpop.f32.mrb[0].mxu0
        %v1516 = vpop.f32.mrb[0].mxu0
        %1517 = vdwg.mxu0
        %v1518 = vadd.f32 %v1513, %v902
        %v1519 = vld [vmem:[%s728] sm:$0x1]
        %v1520 = vld [vmem:[%s736] sm:$0x1]
        %v1521 = vsel %vm927, %v1518, 0.0
        %1522 = vadd.xlane.f32.xlu0 %v1521
        %v1523 = vpop.xlane.xlu0 %1522
        %v1524 = vmul.f32 %v1518, %v1518
        %v1525 = vsel %vm927, %v1524, 0.0
        %1526 = vadd.xlane.f32.xlu0 %v1525
        %v1527 = vpop.xlane.xlu0 %1526
        %v1528 = vmul.f32 %v1523, 0.03125
        %v1529 = vmul.f32 %v1527, 0.03125
        %v1530 = vmul.f32 %v1528, %v1528
        %v1531 = vsub.f32 %v1529, %v1530
        %v1532 = vsub.f32 %v1518, %v1528
        %v1533 = vadd.f32 %v1531, 1e-05
        %v1534 = vrsqrt.pop %v1533
        %v1535 = vmul.f32 %v1532, %v1534
        %v1537 = vlaneseq
        %v1538 = vshrl.u32 %v1537, 7
        %v1539 = vsub.s32 0, %v1538
        %v1540 = vrot.slane %v1519, %v1539
        %v1542 = vmul.f32 %v1535, %v1540
        %v1544 = vlaneseq
        %v1545 = vshrl.u32 %v1544, 7
        %v1546 = vsub.s32 0, %v1545
        %v1547 = vrot.slane %v1520, %v1546
        %v1549 = vadd.f32 %v1542, %v1547
        %v1550 = vpack.c.bf16 %v1549, %v1549
        %v1551 = vld [vmem:[%s745] sm:$0xf]
        %v1552 = vld [vmem:[%s745 + $0x4] sm:$0xf]
        %v1553 = vld [vmem:[%s745 + $0x8] sm:$0xf]
        %v1554 = vld [vmem:[%s745 + $0xc] sm:$0xf]
        %v1555 = vld [vmem:[%s753] sm:$0x1]
        %v1557 = vlaneseq
        %v1558 = vshrl.u32 %v1557, 7
        %v1559 = vsub.s32 0, %v1558
        %v1560 = vrot.slane %v1555, %v1559
        %v1566 = vunpack.c.l.b16 %v1551
        %v1567 = vunpack.c.l.b16 %v1552
        %v1568 = vunpack.c.l.b16 %v1553
        %v1569 = vunpack.c.l.b16 %v1554
        %v1570 = vpack.c.b16 %v1567, %v1566
        %v1571 = vpack.c.b16 %v1569, %v1568
        %v1575 = vsel %vm927, %v1550, 0
        %1577 = vmatprep.subr.bf16.mxu0 0
        %1578 = vmatpush1.bf16.msra.mxu0 %v1570
        %1579 = vmatprep.subr.bf16.mxu0 0
        %1580 = vmatpush1.bf16.msra.mxu0 %v1571
        %1581 = vmatprep.subr.bf16.mxu0 0
        %1582 = vmatpush1.bf16.msra.mxu0 0
        %1583 = vmatprep.subr.bf16.mxu0 0
        %1584 = vmatpush1.bf16.msra.mxu0 0
        %1585 = vmatprep.subr.bf16.mxu0 0
        %1586 = vmatpush1.bf16.msra.mxu0 0
        %1587 = vmatprep.subr.bf16.mxu0 0
        %1588 = vmatpush1.bf16.msra.mxu0 0
        %1589 = vmatprep.subr.bf16.mxu0 0
        %1590 = vmatpush1.bf16.msra.mxu0 0
        %1591 = vmatprep.subr.bf16.mxu0 0
        %1592 = vmatpush1.bf16.msra.mxu0 0
        %1593 = vmatprep.subr.bf16.mxu0 0
        %1594 = vmatpush1.bf16.msra.mxu0 0
        %1595 = vmatprep.subr.bf16.mxu0 0
        %1596 = vmatpush1.bf16.msra.mxu0 0
        %1597 = vmatprep.subr.bf16.mxu0 0
        %1598 = vmatpush1.bf16.msra.mxu0 0
        %1599 = vmatprep.subr.bf16.mxu0 0
        %1600 = vmatpush1.bf16.msra.mxu0 0
        %1601 = vmatprep.subr.bf16.mxu0 0
        %1602 = vmatpush1.bf16.msra.mxu0 0
        %1603 = vmatprep.subr.bf16.mxu0 0
        %1604 = vmatpush1.bf16.msra.mxu0 0
        %1605 = vmatprep.subr.bf16.mxu0 0
        %1606 = vmatpush1.bf16.msra.mxu0 0
        %1607 = vmatprep.subr.bf16.mxu0 0
        %1608 = vmatpush1.bf16.msra.mxu0 0
        %1609 = vmatprep.mubr.bf16.mxu0 0
        %1610 = vmatmul.mubr.bf16.gmra.mrb[0].mxu0 %v1575
        %v1611 = vpop.f32.mrb[0].mxu0
        %v1612 = vadd.f32 %v1560, %v1611
        %v1613 = vpop.f32.mrb[0].mxu0
        %v1614 = vpop.f32.mrb[0].mxu0
        %v1615 = vpop.f32.mrb[0].mxu0
        %1616 = vdwg.mxu0
        %v1617 = vmax.f32 %v1612, 0.0
        %v1618 = vpack.c.bf16 %v1617, %v1617
        %v1619 = vld [vmem:[%s762] sm:$0xf]
        %v1620 = vld [vmem:[%s762 + $0x4] sm:$0xf]
        %v1621 = vld [vmem:[%s762 + $0x8] sm:$0xf]
        %v1622 = vld [vmem:[%s762 + $0xc] sm:$0xf]
        %v1623 = vld [vmem:[%s762 + $0x10] sm:$0xf]
        %v1624 = vld [vmem:[%s762 + $0x14] sm:$0xf]
        %v1625 = vld [vmem:[%s762 + $0x18] sm:$0xf]
        %v1626 = vld [vmem:[%s762 + $0x1c] sm:$0xf]
        %v1627 = vld [vmem:[%s770] sm:$0x1]
        %v1629 = vlaneseq
        %v1630 = vshrl.u32 %v1629, 7
        %v1631 = vsub.s32 0, %v1630
        %v1632 = vrot.slane %v1627, %v1631
        %v1642 = vunpack.c.l.b16 %v1619
        %v1643 = vunpack.c.l.b16 %v1620
        %v1644 = vunpack.c.l.b16 %v1621
        %v1645 = vunpack.c.l.b16 %v1622
        %v1646 = vunpack.c.l.b16 %v1623
        %v1647 = vunpack.c.l.b16 %v1624
        %v1648 = vunpack.c.l.b16 %v1625
        %v1649 = vunpack.c.l.b16 %v1626
        %v1650 = vpack.c.b16 %v1643, %v1642
        %v1651 = vpack.c.b16 %v1645, %v1644
        %v1652 = vpack.c.b16 %v1647, %v1646
        %v1653 = vpack.c.b16 %v1649, %v1648
        %vm1658 = vcmask 523264
        %v1660 = vsel %vm1658, %v1618, 0
        %1662 = vmatprep.subr.bf16.mxu0 0
        %1663 = vmatpush1.bf16.msra.mxu0 %v1650
        %1664 = vmatprep.subr.bf16.mxu0 0
        %1665 = vmatpush1.bf16.msra.mxu0 %v1651
        %1666 = vmatprep.subr.bf16.mxu0 0
        %1667 = vmatpush1.bf16.msra.mxu0 %v1652
        %1668 = vmatprep.subr.bf16.mxu0 0
        %1669 = vmatpush1.bf16.msra.mxu0 %v1653
        %1670 = vmatprep.subr.bf16.mxu0 0
        %1671 = vmatpush1.bf16.msra.mxu0 0
        %1672 = vmatprep.subr.bf16.mxu0 0
        %1673 = vmatpush1.bf16.msra.mxu0 0
        %1674 = vmatprep.subr.bf16.mxu0 0
        %1675 = vmatpush1.bf16.msra.mxu0 0
        %1676 = vmatprep.subr.bf16.mxu0 0
        %1677 = vmatpush1.bf16.msra.mxu0 0
        %1678 = vmatprep.subr.bf16.mxu0 0
        %1679 = vmatpush1.bf16.msra.mxu0 0
        %1680 = vmatprep.subr.bf16.mxu0 0
        %1681 = vmatpush1.bf16.msra.mxu0 0
        %1682 = vmatprep.subr.bf16.mxu0 0
        %1683 = vmatpush1.bf16.msra.mxu0 0
        %1684 = vmatprep.subr.bf16.mxu0 0
        %1685 = vmatpush1.bf16.msra.mxu0 0
        %1686 = vmatprep.subr.bf16.mxu0 0
        %1687 = vmatpush1.bf16.msra.mxu0 0
        %1688 = vmatprep.subr.bf16.mxu0 0
        %1689 = vmatpush1.bf16.msra.mxu0 0
        %1690 = vmatprep.subr.bf16.mxu0 0
        %1691 = vmatpush1.bf16.msra.mxu0 0
        %1692 = vmatprep.subr.bf16.mxu0 0
        %1693 = vmatpush1.bf16.msra.mxu0 0
        %1694 = vmatprep.mubr.bf16.mxu0 0
        %1695 = vmatmul.mubr.bf16.gmra.mrb[0].mxu0 %v1660
        %v1696 = vpop.f32.mrb[0].mxu0
        %v1697 = vadd.f32 %v1632, %v1696
        %v1698 = vpop.f32.mrb[0].mxu0
        %v1699 = vpop.f32.mrb[0].mxu0
        %v1700 = vpop.f32.mrb[0].mxu0
        %1701 = vdwg.mxu0
        %v1702 = vadd.f32 %v1697, %v1549
        %v1703 = vld [vmem:[%s778] sm:$0x1]
        %v1704 = vld [vmem:[%s786] sm:$0x1]
        %v1705 = vsel %vm927, %v1702, 0.0
        %1706 = vadd.xlane.f32.xlu0 %v1705
        %v1707 = vpop.xlane.xlu0 %1706
        %v1708 = vmul.f32 %v1702, %v1702
        %v1709 = vsel %vm927, %v1708, 0.0
        %1710 = vadd.xlane.f32.xlu0 %v1709
        %v1711 = vpop.xlane.xlu0 %1710
        %v1712 = vmul.f32 %v1707, 0.03125
        %v1713 = vmul.f32 %v1711, 0.03125
        %v1714 = vmul.f32 %v1712, %v1712
        %v1715 = vsub.f32 %v1713, %v1714
        %v1716 = vsub.f32 %v1702, %v1712
        %v1717 = vadd.f32 %v1715, 1e-05
        %v1718 = vrsqrt.pop %v1717
        %v1719 = vmul.f32 %v1716, %v1718
        %v1721 = vlaneseq
        %v1722 = vshrl.u32 %v1721, 7
        %v1723 = vsub.s32 0, %v1722
        %v1724 = vrot.slane %v1703, %v1723
        %v1726 = vmul.f32 %v1719, %v1724
        %v1728 = vlaneseq
        %v1729 = vshrl.u32 %v1728, 7
        %v1730 = vsub.s32 0, %v1729
        %v1731 = vrot.slane %v1704, %v1730
        %v1733 = vadd.f32 %v1726, %v1731
        %1734 = vst.msk [vmem:[%s879] sm:$0xff] %vm927, %v1733
        %s1735 = sand.u32 %s407, 1
        %s1736 = scalar_lea.sflag [#allocation5], %s1735
        %s1737 = sand.u32 %s407, 1
        %s1738 = smul.addr %s1737, 8
        %s1739 = scalar_lea.vmem [#allocation24], %s1738
        // Predicated region
        $region133: #{tpu_custom_call.1} parent=71 // pred_check
          %p1740 = pneg %p417
        $region134: #{tpu_custom_call.1} parent=71 // pred_check_branch
          %1742 = sbr.rel (%p1740) target = $region136
        $region135: #{tpu_custom_call.1} parent=71 // pred_region
          %s1744 = ssub.s32 128, 128
          %1745 = vsyncadd %s1736, %s1744
          %s1746 = smul.addr %s53, 128
          %s1747 = scalar_lea.hbm %s14, %s1746
          %s1749 = sshll.u32 %s1739, 4
          %s1750 = int_to_ptr.vmem [resolvable:$true] %s1749
          %1752 = dma.vmem_to_hbm [thread:$0]  %s1750, 128, %s1747, %s1736
        $region136: #{tpu_custom_call.1} parent=71 // pred_fallthru
          _
      $region72: #{tpu_custom_call.1} parent=5 // pred_fallthru
        _
      %p1753 = scmp.le.s32.totalorder 2, %s44
      // Predicated region
      $region137: #{tpu_custom_call.1} parent=5 // pred_check
        %p1754 = pneg %p1753
      $region138: #{tpu_custom_call.1} parent=5 // pred_check_branch
        %1756 = sbr.rel (%p1754) target = $region140
      $region139: #{tpu_custom_call.1} parent=5 // pred_region
        %s1757 = ssub.s32 %s44, 2
        // Predicated region
        $region141: #{tpu_custom_call.1} parent=139 // pred_check
          %p1758 = pneg %p423
        $region142: #{tpu_custom_call.1} parent=139 // pred_check_branch
          %1760 = sbr.rel (%p1758) target = $region144
        $region143: #{tpu_custom_call.1} parent=139 // pred_region
          %s1761 = sand.u32 %s408, 1
          %s1762 = scalar_lea.sflag [#allocation5], %s1761
          %s1763 = sand.u32 %s408, 1
          %s1764 = smul.addr %s1763, 8
          %s1765 = scalar_lea.vmem [#allocation24], %s1764
          %1766 = dma.done %s1762, 128
        $region144: #{tpu_custom_call.1} parent=139 // pred_fallthru
          _
      $region140: #{tpu_custom_call.1} parent=5 // pred_fallthru
        _
    $region6: #{tpu_custom_call.1} parent=1 // loop_footer
      %s48 = sadd.s32 1, %s44
    $region7: #{tpu_custom_call.1} parent=1 // loop_footer_branch
      %43 = sbr.rel target = $region3
    $region8: #{tpu_custom_call.1} parent=1 // loop_exit
      _
    %1767 = vsyncpa [#allocation4], 1
    %s1768 = scalar_lea.sflag [#allocation4], 1
    %1769 = vsyncpa %s1768, 1
    %1770 = vsyncpa [#allocation7], 1
    %s1771 = scalar_lea.sflag [#allocation7], 1
    %1772 = vsyncpa %s1771, 1
    %1773 = vsyncpa [#allocation10], 1
    %s1774 = scalar_lea.sflag [#allocation10], 1
    %1775 = vsyncpa %s1774, 1
    %1776 = vsyncpa [#allocation13], 1
    %s1777 = scalar_lea.sflag [#allocation13], 1
    %1778 = vsyncpa %s1777, 1
    %1779 = vsyncpa [#allocation16], 1
    %s1780 = scalar_lea.sflag [#allocation16], 1
    %1781 = vsyncpa %s1780, 1
    %1782 = vsyncpa [#allocation19], 1
    %s1783 = scalar_lea.sflag [#allocation19], 1
    %1784 = vsyncpa %s1783, 1
    %1785 = vsyncpa [#allocation22], 1
    %s1786 = scalar_lea.sflag [#allocation22], 1
    %1787 = vsyncpa %s1786, 1
    %1788 = vsyncpa [#allocation5], 1
    %s1789 = scalar_lea.sflag [#allocation5], 1
    %1790 = vsyncpa %s1789, 1
  %1791 = vsyncmov [#allocation2]
  %s1792 = vpop.sfrf %1791
  %p1793 = scmp.eq.s32.totalorder %s1792, 0
  %p1794 = pneg %p1793
  %1796 = shalt.err (%p1794)

</llo_original>
